<compile_context>
chip_gen: v7x
topology: tpu7x:2x2x1
jax: 0.10.0
libtpu: 0.0.40
codegen_flags: <defaults>
</compile_context>

<pallas_src>
import jax
import jax.numpy as jnp
from jax.experimental import pallas as pl
from jax.experimental.pallas import tpu as pltpu

# ---- "ModelConfig" (synthetic, small) ----
HIDDEN_SIZE = 32
NUM_HEADS = 4
HEAD_DIM = HIDDEN_SIZE // NUM_HEADS
SEQ_LEN = 8
BATCH = 2
DROPOUT_RATE = 0.0  # inference: dropout is a no-op

PROJ_PAD = 128  # lane-dense output width (real H columns live in [:HIDDEN_SIZE])


def mha_kernel(x_ref, wqkv_ref, bqkv_ref, wproj_ref, bproj_ref, bias_ref, o_ref):
    """Single invocation: all batch elements processed in one shot.

    x_ref     : (B*S, H)        flattened activations
    wqkv_ref  : (H, 3H)         Q columns pre-scaled by 1/sqrt(head_dim)
    bqkv_ref  : (1, 3H)
    wproj_ref : (H, 128)        output projection, zero-padded to 128 lanes
    bproj_ref : (1, 128)
    bias_ref  : (B*S, B*S)      block-diagonal additive mask (0 / -1e30)
    o_ref     : (B*S, 128)      lane-dense output slab
    """
    BS, H = x_ref.shape
    NH = NUM_HEADS
    D = H // NH

    x = x_ref[...]  # (BS, H)

    # Fused QKV projection over all batch rows at once: (BS, H) @ (H, 3H).
    # The 1/sqrt(D) attention scale is pre-folded into the Q columns.
    qkv = jnp.dot(x, wqkv_ref[...], preferred_element_type=jnp.float32) + bqkv_ref[...]

    # Head-major regroup: (BS, H) -> (NH, BS, D).  Batch stays folded into the
    # "sequence" axis; cross-batch mixing is killed by the additive mask below.
    q = qkv[:, 0 * H:1 * H].reshape(BS, NH, D).transpose(1, 0, 2)  # (NH, BS, D)
    k = qkv[:, 1 * H:2 * H].reshape(BS, NH, D).transpose(1, 0, 2)  # (NH, BS, D)
    v = qkv[:, 2 * H:3 * H].reshape(BS, NH, D).transpose(1, 0, 2)  # (NH, BS, D)

    # All heads and all batch rows in one contraction (contract over d directly,
    # no explicit k.T).
    s = jnp.einsum('hsd,htd->hst', q, k,
                   preferred_element_type=jnp.float32)             # (NH, BS, BS)

    # Block-diagonal mask: 0 within a batch element, -1e30 across elements, so
    # softmax over the folded axis equals per-batch softmax exactly.
    s = s + bias_ref[...][None, :, :]

    # Numerically stable softmax along the last axis (f32).
    s = s - jnp.max(s, axis=-1, keepdims=True)
    p = jnp.exp(s)
    denom = jnp.sum(p, axis=-1, keepdims=True)
    r = pl.reciprocal(denom, approx=True)      # EUP slot (idle next to the exp)
    r = r * (2.0 - denom * r)                  # one Newton step -> ~f32 accuracy
    p = p * r

    # dropout(attn): identity at inference  # TODO(synk): train-mode dropout omitted

    ctx = jnp.einsum('hst,htd->hsd', p, v,
                     preferred_element_type=jnp.float32)            # (NH, BS, D)
    ctx = ctx.transpose(1, 0, 2).reshape(BS, H)                     # (BS, H)

    # Output projection into a lane-dense (BS, 128) slab -> unmasked stores.
    out = jnp.dot(ctx, wproj_ref[...], preferred_element_type=jnp.float32) + bproj_ref[...]
    o_ref[...] = out.astype(o_ref.dtype)


@jax.jit
def multi_head_attention(x, w_qkv, b_qkv, w_proj, b_proj):
    """x: (B, S, H).  w_qkv: (3H, H) torch layout; w_proj: (H, H) torch layout."""
    B, S, H = x.shape
    BS = B * S

    # Fold the 1/sqrt(head_dim) score scale into the Q rows of the QKV weight
    # and bias (torch layout: rows [0, H) are the Q projection).
    scale = jnp.asarray(HEAD_DIM, dtype=x.dtype) ** -0.5
    scale_vec = jnp.concatenate(
        [jnp.full((H,), scale, dtype=x.dtype), jnp.ones((2 * H,), dtype=x.dtype)])
    wqkv_t = (w_qkv * scale_vec[:, None]).T          # (H, 3H), Q columns pre-scaled
    bqkv2d = (b_qkv * scale_vec).reshape(1, 3 * H)

    # Output projection padded to 128 lanes (zeros beyond H) -> lane-dense store.
    wproj_pad = jnp.zeros((H, PROJ_PAD), dtype=x.dtype).at[:, :H].set(w_proj.T)
    bproj_pad = jnp.zeros((1, PROJ_PAD), dtype=x.dtype).at[0, :H].set(b_proj)

    # Block-diagonal additive mask built once in the wrapper (1 KiB) -- keeps
    # iota / integer-div work out of the kernel.
    blk = jnp.arange(BS, dtype=jnp.int32) // S
    attn_bias = jnp.where(blk[:, None] == blk[None, :],
                          jnp.asarray(0.0, x.dtype),
                          jnp.asarray(-1e30, x.dtype))              # (BS, BS)

    x2d = x.reshape(BS, H)

    out_pad = pl.pallas_call(
        mha_kernel,
        out_shape=jax.ShapeDtypeStruct((BS, PROJ_PAD), x.dtype),
        grid_spec=pltpu.PrefetchScalarGridSpec(
            num_scalar_prefetch=0,
            grid=(1,),  # single step: no per-batch grid bookkeeping
            in_specs=[
                pl.BlockSpec((BS, H), lambda i: (0, 0)),
                pl.BlockSpec((H, 3 * H), lambda i: (0, 0)),
                pl.BlockSpec((1, 3 * H), lambda i: (0, 0)),
                pl.BlockSpec((H, PROJ_PAD), lambda i: (0, 0)),
                pl.BlockSpec((1, PROJ_PAD), lambda i: (0, 0)),
                pl.BlockSpec((BS, BS), lambda i: (0, 0)),
            ],
            out_specs=pl.BlockSpec((BS, PROJ_PAD), lambda i: (0, 0)),
        ),
        compiler_params=pltpu.CompilerParams(
            dimension_semantics=("arbitrary",),
        ),
    )(x2d, wqkv_t, bqkv2d, wproj_pad, bproj_pad, attn_bias)

    # Slice away the padded lanes and restore (B, S, H).
    return out_pad[:, :H].reshape(B, S, H)


def reference_mha(x, w_qkv, b_qkv, w_proj, b_proj):
    """Pure-JAX reference mirroring the PyTorch forward (eval mode)."""
    B, S, H = x.shape
    qkv = x @ w_qkv.T + b_qkv                                   # (B, S, 3H)
    qkv = qkv.reshape(B, S, 3, NUM_HEADS, HEAD_DIM)
    qkv = jnp.transpose(qkv, (2, 0, 3, 1, 4))                   # (3, B, nh, S, D)
    q, k, v = qkv[0], qkv[1], qkv[2]
    attn = (q @ jnp.swapaxes(k, -2, -1)) * (HEAD_DIM ** -0.5)   # (B, nh, S, S)
    attn = jax.nn.softmax(attn, axis=-1)
    out = attn @ v                                              # (B, nh, S, D)
    out = jnp.transpose(out, (0, 2, 1, 3)).reshape(B, S, H)
    return out @ w_proj.T + b_proj


if __name__ == "__main__":
    key = jax.random.PRNGKey(0)
    kx, k1, k2, k3, k4 = jax.random.split(key, 5)

    x = jax.random.normal(kx, (BATCH, SEQ_LEN, HIDDEN_SIZE), dtype=jnp.float32)

    # Deterministic parameter init (torch nn.Linear-like uniform bounds)
    bound_qkv = 1.0 / (HIDDEN_SIZE ** 0.5)
    w_qkv = jax.random.uniform(k1, (3 * HIDDEN_SIZE, HIDDEN_SIZE),
                               minval=-bound_qkv, maxval=bound_qkv, dtype=jnp.float32)
    b_qkv = jax.random.uniform(k2, (3 * HIDDEN_SIZE,),
                               minval=-bound_qkv, maxval=bound_qkv, dtype=jnp.float32)
    w_proj = jax.random.uniform(k3, (HIDDEN_SIZE, HIDDEN_SIZE),
                                minval=-bound_qkv, maxval=bound_qkv, dtype=jnp.float32)
    b_proj = jax.random.uniform(k4, (HIDDEN_SIZE,),
                                minval=-bound_qkv, maxval=bound_qkv, dtype=jnp.float32)

    out = multi_head_attention(x, w_qkv, b_qkv, w_proj, b_proj)
    out = jax.block_until_ready(out)

    ref = reference_mha(x, w_qkv, b_qkv, w_proj, b_proj)
    assert out.shape == (BATCH, SEQ_LEN, HIDDEN_SIZE)
    assert jnp.allclose(out, ref, rtol=1e-4, atol=1e-5), "mismatch vs reference"

    print("KERNEL_OK")
</pallas_src>

<mosaic_0001>
module attributes {stable_mosaic.version = 11 : i64} {
  func.func @mha_kernel(%arg0: i32, %arg1: memref<16x32xf32, #tpu.memory_space<vmem>>, %arg2: memref<32x96xf32, #tpu.memory_space<vmem>>, %arg3: memref<1x96xf32, #tpu.memory_space<vmem>>, %arg4: memref<32x128xf32, #tpu.memory_space<vmem>>, %arg5: memref<1x128xf32, #tpu.memory_space<vmem>>, %arg6: memref<16x16xf32, #tpu.memory_space<vmem>>, %arg7: memref<16x128xf32, #tpu.memory_space<vmem>>) attributes {dimension_semantics = [#tpu.dimension_semantics<arbitrary>], iteration_bounds = array<i64: 1>, scalar_prefetch = 0 : i64, scratch_operands = 0 : i64, tpu.core_type = #tpu.core_type<tc>, window_params = [{pipeline_mode = #tpu.pipeline_mode<synchronous>, transform_indices = @transform_0, window_bounds = array<i64: 16, 32>}, {pipeline_mode = #tpu.pipeline_mode<synchronous>, transform_indices = @transform_1, window_bounds = array<i64: 32, 96>}, {pipeline_mode = #tpu.pipeline_mode<synchronous>, transform_indices = @transform_2, window_bounds = array<i64: 1, 96>}, {pipeline_mode = #tpu.pipeline_mode<synchronous>, transform_indices = @transform_3, window_bounds = array<i64: 32, 128>}, {pipeline_mode = #tpu.pipeline_mode<synchronous>, transform_indices = @transform_4, window_bounds = array<i64: 1, 128>}, {pipeline_mode = #tpu.pipeline_mode<synchronous>, transform_indices = @transform_5, window_bounds = array<i64: 16, 16>}, {pipeline_mode = #tpu.pipeline_mode<synchronous>, transform_indices = @transform_6, window_bounds = array<i64: 16, 128>}]} {
    %c0 = arith.constant 0 : index
    %c0_0 = arith.constant 0 : index
    %0 = vector.load %arg1[%c0, %c0_0] : memref<16x32xf32, #tpu.memory_space<vmem>>, vector<16x32xf32>
    %c0_1 = arith.constant 0 : index
    %c0_2 = arith.constant 0 : index
    %1 = vector.load %arg2[%c0_1, %c0_2] : memref<32x96xf32, #tpu.memory_space<vmem>>, vector<32x96xf32>
    %cst = arith.constant dense<0.000000e+00> : vector<16x96xf32>
    %2 = tpu.matmul %0, %1, %cst {dimension_numbers = #tpu.dot_dimension_numbers<[1], [0], [0], [1], [0, 0, 1, 1], [], []>} : vector<16x32xf32>, vector<32x96xf32>, vector<16x96xf32> -> vector<16x96xf32>
    %c0_3 = arith.constant 0 : index
    %c0_4 = arith.constant 0 : index
    %3 = vector.load %arg3[%c0_3, %c0_4] : memref<1x96xf32, #tpu.memory_space<vmem>>, vector<1x96xf32>
    %4 = vector.broadcast %3 : vector<1x96xf32> to vector<16x96xf32>
    %5 = arith.addf %2, %4 : vector<16x96xf32>
    %6 = vector.extract_strided_slice %5 {offsets = [0, 0], sizes = [16, 32], strides = [1, 1]} : vector<16x96xf32> to vector<16x32xf32>
    %7 = vector.shape_cast %6 : vector<16x32xf32> to vector<16x4x8xf32>
    %8 = tpu.transpose %7, [1, 0, 2] : vector<16x4x8xf32> -> vector<4x16x8xf32>
    %9 = vector.extract_strided_slice %5 {offsets = [0, 32], sizes = [16, 32], strides = [1, 1]} : vector<16x96xf32> to vector<16x32xf32>
    %10 = vector.shape_cast %9 : vector<16x32xf32> to vector<16x4x8xf32>
    %11 = tpu.transpose %10, [1, 0, 2] : vector<16x4x8xf32> -> vector<4x16x8xf32>
    %12 = vector.extract_strided_slice %5 {offsets = [0, 64], sizes = [16, 32], strides = [1, 1]} : vector<16x96xf32> to vector<16x32xf32>
    %13 = vector.shape_cast %12 : vector<16x32xf32> to vector<16x4x8xf32>
    %14 = tpu.transpose %13, [1, 0, 2] : vector<16x4x8xf32> -> vector<4x16x8xf32>
    "tpu.trace_start"() <{level = 10 : i32, message = "hsd,htd->hst"}> : () -> ()
    %cst_5 = arith.constant dense<0.000000e+00> : vector<4x16x16xf32>
    %15 = tpu.matmul %8, %11, %cst_5 {dimension_numbers = #tpu.dot_dimension_numbers<[2], [2], [1], [1], [0, 0, 0, 1, 1, 1], [0], [0]>} : vector<4x16x8xf32>, vector<4x16x8xf32>, vector<4x16x16xf32> -> vector<4x16x16xf32>
    "tpu.trace_stop"() : () -> ()
    %c0_6 = arith.constant 0 : index
    %c0_7 = arith.constant 0 : index
    %16 = vector.load %arg6[%c0_6, %c0_7] : memref<16x16xf32, #tpu.memory_space<vmem>>, vector<16x16xf32>
    %17 = vector.shape_cast %16 : vector<16x16xf32> to vector<1x16x16xf32>
    %18 = vector.broadcast %17 : vector<1x16x16xf32> to vector<4x16x16xf32>
    %19 = arith.addf %15, %18 : vector<4x16x16xf32>
    %cst_8 = arith.constant dense<0xFF800000> : vector<4x16xf32>
    %20 = vector.multi_reduction <maximumf>, %19, %cst_8 [2] : vector<4x16x16xf32> to vector<4x16xf32>
    %21 = vector.shape_cast %20 : vector<4x16xf32> to vector<4x16x1xf32>
    %22 = vector.broadcast %21 : vector<4x16x1xf32> to vector<4x16x16xf32>
    %23 = arith.subf %19, %22 : vector<4x16x16xf32>
    %24 = math.exp %23 : vector<4x16x16xf32>
    %cst_9 = arith.constant dense<0.000000e+00> : vector<4x16xf32>
    %25 = vector.multi_reduction <add>, %24, %cst_9 [2] : vector<4x16x16xf32> to vector<4x16xf32>
    %26 = vector.shape_cast %25 : vector<4x16xf32> to vector<4x16x1xf32>
    %27 = tpu.reciprocal %26 {approx = true} : vector<4x16x1xf32> -> vector<4x16x1xf32>
    %28 = arith.mulf %26, %27 : vector<4x16x1xf32>
    %cst_10 = arith.constant 2.000000e+00 : f32
    %29 = vector.broadcast %cst_10 : f32 to vector<4x16x1xf32>
    %30 = arith.subf %29, %28 : vector<4x16x1xf32>
    %31 = arith.mulf %27, %30 : vector<4x16x1xf32>
    %32 = vector.broadcast %31 : vector<4x16x1xf32> to vector<4x16x16xf32>
    %33 = arith.mulf %24, %32 : vector<4x16x16xf32>
    "tpu.trace_start"() <{level = 10 : i32, message = "hst,htd->hsd"}> : () -> ()
    %cst_11 = arith.constant dense<0.000000e+00> : vector<4x16x8xf32>
    %34 = tpu.matmul %33, %14, %cst_11 {dimension_numbers = #tpu.dot_dimension_numbers<[2], [1], [1], [2], [0, 0, 0, 1, 1, 2], [0], [0]>} : vector<4x16x16xf32>, vector<4x16x8xf32>, vector<4x16x8xf32> -> vector<4x16x8xf32>
    "tpu.trace_stop"() : () -> ()
    %35 = tpu.transpose %34, [1, 0, 2] : vector<4x16x8xf32> -> vector<16x4x8xf32>
    %36 = vector.shape_cast %35 : vector<16x4x8xf32> to vector<16x32xf32>
    %c0_12 = arith.constant 0 : index
    %c0_13 = arith.constant 0 : index
    %37 = vector.load %arg4[%c0_12, %c0_13] : memref<32x128xf32, #tpu.memory_space<vmem>>, vector<32x128xf32>
    %cst_14 = arith.constant dense<0.000000e+00> : vector<16x128xf32>
    %38 = tpu.matmul %36, %37, %cst_14 {dimension_numbers = #tpu.dot_dimension_numbers<[1], [0], [0], [1], [0, 0, 1, 1], [], []>} : vector<16x32xf32>, vector<32x128xf32>, vector<16x128xf32> -> vector<16x128xf32>
    %c0_15 = arith.constant 0 : index
    %c0_16 = arith.constant 0 : index
    %39 = vector.load %arg5[%c0_15, %c0_16] : memref<1x128xf32, #tpu.memory_space<vmem>>, vector<1x128xf32>
    %40 = vector.broadcast %39 : vector<1x128xf32> to vector<16x128xf32>
    %41 = arith.addf %38, %40 : vector<16x128xf32>
    %c0_17 = arith.constant 0 : index
    %c0_18 = arith.constant 0 : index
    %42 = vector.load %arg7[%c0_17, %c0_18] : memref<16x128xf32, #tpu.memory_space<vmem>>, vector<16x128xf32>
    tpu.vector_store %arg7[%c0_17, %c0_18], %41 {strides = array<i32>} : memref<16x128xf32, #tpu.memory_space<vmem>>, vector<16x128xf32>,
    return
  }
  func.func @transform_0(%arg0: i32) -> (i32, i32) {
    %c0_i32 = arith.constant 0 : i32
    %c0_i32_0 = arith.constant 0 : i32
    %c0_i32_1 = arith.constant 0 : i32
    return %c0_i32, %c0_i32_0 : i32, i32
  }
  func.func @transform_1(%arg0: i32) -> (i32, i32) {
    %c0_i32 = arith.constant 0 : i32
    %c0_i32_0 = arith.constant 0 : i32
    %c0_i32_1 = arith.constant 0 : i32
    return %c0_i32, %c0_i32_0 : i32, i32
  }
  func.func @transform_2(%arg0: i32) -> (i32, i32) {
    %c0_i32 = arith.constant 0 : i32
    %c0_i32_0 = arith.constant 0 : i32
    %c0_i32_1 = arith.constant 0 : i32
    return %c0_i32, %c0_i32_0 : i32, i32
  }
  func.func @transform_3(%arg0: i32) -> (i32, i32) {
    %c0_i32 = arith.constant 0 : i32
    %c0_i32_0 = arith.constant 0 : i32
    %c0_i32_1 = arith.constant 0 : i32
    return %c0_i32, %c0_i32_0 : i32, i32
  }
  func.func @transform_4(%arg0: i32) -> (i32, i32) {
    %c0_i32 = arith.constant 0 : i32
    %c0_i32_0 = arith.constant 0 : i32
    %c0_i32_1 = arith.constant 0 : i32
    return %c0_i32, %c0_i32_0 : i32, i32
  }
  func.func @transform_5(%arg0: i32) -> (i32, i32) {
    %c0_i32 = arith.constant 0 : i32
    %c0_i32_0 = arith.constant 0 : i32
    %c0_i32_1 = arith.constant 0 : i32
    return %c0_i32, %c0_i32_0 : i32, i32
  }
  func.func @transform_6(%arg0: i32) -> (i32, i32) {
    %c0_i32 = arith.constant 0 : i32
    %c0_i32_0 = arith.constant 0 : i32
    %c0_i32_1 = arith.constant 0 : i32
    return %c0_i32, %c0_i32_0 : i32, i32
  }
}

</mosaic_0001>

<llo_original>
// kernel: multi_head_attention.1
$region0: #{multi_head_attention.1}
  #allocation0 [shape = 'u32[]', space=smem, size = 0x4, offset = 0x4, fixed_abs, tag = 'smem constant byte address 0x4 - core index']
  #allocation1 [shape = 'u32[144,128]{1,0:T(1,128)}', space=vmem, size = 0x12000, scoped, tag = 'internal scratch']
  %s0 = inlined_call_operand.vmem [shape: f32[16,32], index: 0, kind: input, shape index: {}]
  %s1 = inlined_call_operand.vmem [shape: f32[32,96], index: 1, kind: input, shape index: {}]
  %s2 = inlined_call_operand.vmem [shape: f32[1,96], index: 2, kind: input, shape index: {}]
  %s3 = inlined_call_operand.vmem [shape: f32[32,128], index: 3, kind: input, shape index: {}]
  %s4 = inlined_call_operand.vmem [shape: f32[1,128], index: 4, kind: input, shape index: {}]
  %s5 = inlined_call_operand.vmem [shape: f32[16,16], index: 5, kind: input, shape index: {}]
  %s6 = inlined_call_operand.vmem [shape: f32[16,128], index: 6, kind: output, shape index: {}]
  %s7 = sld [smem:[#allocation0]]
  $region34: #{multi_head_attention.1} parent=0
    _
  %s9 = ssub.s32 1, %s7
  %s10 = scalar_select 0, %s9, %s7
  // Predicated region
  $region2: #{multi_head_attention.1} parent=0 // pred_check
    _
  $region3: #{multi_head_attention.1} parent=0 // pred_check_branch
    %12 = sbr.rel (0) target = $region5
  $region4: #{multi_head_attention.1} parent=0 // pred_region
    _
  $region5: #{multi_head_attention.1} parent=0 // pred_fallthru
    _
  // Predicated region
  $region6: #{multi_head_attention.1} parent=0 // pred_check
    _
  $region7: #{multi_head_attention.1} parent=0 // pred_check_branch
    %14 = sbr.rel (0) target = $region9
  $region8: #{multi_head_attention.1} parent=0 // pred_region
    _
  $region9: #{multi_head_attention.1} parent=0 // pred_fallthru
    _
  // Predicated region
  $region10: #{multi_head_attention.1} parent=0 // pred_check
    _
  $region11: #{multi_head_attention.1} parent=0 // pred_check_branch
    %16 = sbr.rel (0) target = $region13
  $region12: #{multi_head_attention.1} parent=0 // pred_region
    _
  $region13: #{multi_head_attention.1} parent=0 // pred_fallthru
    _
  // Predicated region
  $region14: #{multi_head_attention.1} parent=0 // pred_check
    _
  $region15: #{multi_head_attention.1} parent=0 // pred_check_branch
    %18 = sbr.rel (0) target = $region17
  $region16: #{multi_head_attention.1} parent=0 // pred_region
    _
  $region17: #{multi_head_attention.1} parent=0 // pred_fallthru
    _
  // Predicated region
  $region18: #{multi_head_attention.1} parent=0 // pred_check
    _
  $region19: #{multi_head_attention.1} parent=0 // pred_check_branch
    %20 = sbr.rel (0) target = $region21
  $region20: #{multi_head_attention.1} parent=0 // pred_region
    _
  $region21: #{multi_head_attention.1} parent=0 // pred_fallthru
    _
  // Predicated region
  $region22: #{multi_head_attention.1} parent=0 // pred_check
    _
  $region23: #{multi_head_attention.1} parent=0 // pred_check_branch
    %22 = sbr.rel (0) target = $region25
  $region24: #{multi_head_attention.1} parent=0 // pred_region
    _
  $region25: #{multi_head_attention.1} parent=0 // pred_fallthru
    _
  %v23 = vld [vmem:[%s0] sm:$0xff]
  %v24 = vld [vmem:[%s0 + $0x8] sm:$0xff]
  %v25 = vld [vmem:[%s1] sm:$0xff]
  %v26 = vld [vmem:[%s1 + $0x8] sm:$0xff]
  %v27 = vld [vmem:[%s1 + $0x10] sm:$0xff]
  %v28 = vld [vmem:[%s1 + $0x18] sm:$0xff]
  %v29 = vld [vmem:[%s2] sm:$0x1]
  %v31 = vlaneseq
  %v32 = vshrl.u32 %v31, 7
  %v33 = vsub.s32 0, %v32
  %v34 = vrot.slane %v29, %v33
  %vm36 = vcmask 261120
  %v38 = vsel %vm36, %v23, 0
  %v41 = vsel %vm36, %v24, 0
  %43 = vmatprep.subr.mxu0 0.0
  %44 = vmatpush1.msra.mxu0 %v25
  %45 = vmatprep.subr.mxu0 0.0
  %46 = vmatpush1.msra.mxu0 %v26
  %47 = vmatprep.subr.mxu0 0.0
  %48 = vmatpush1.msra.mxu0 %v27
  %49 = vmatprep.subr.mxu0 0.0
  %50 = vmatpush1.msra.mxu0 %v28
  %51 = vmatprep.subr.mxu0 0.0
  %52 = vmatpush1.msra.mxu0 0.0
  %53 = vmatprep.subr.mxu0 0.0
  %54 = vmatpush1.msra.mxu0 0.0
  %55 = vmatprep.subr.mxu0 0.0
  %56 = vmatpush1.msra.mxu0 0.0
  %57 = vmatprep.subr.mxu0 0.0
  %58 = vmatpush1.msra.mxu0 0.0
  %59 = vmatprep.subr.mxu0 0.0
  %60 = vmatpush1.msra.mxu0 0.0
  %61 = vmatprep.subr.mxu0 0.0
  %62 = vmatpush1.msra.mxu0 0.0
  %63 = vmatprep.subr.mxu0 0.0
  %64 = vmatpush1.msra.mxu0 0.0
  %65 = vmatprep.subr.mxu0 0.0
  %66 = vmatpush1.msra.mxu0 0.0
  %67 = vmatprep.subr.mxu0 0.0
  %68 = vmatpush1.msra.mxu0 0.0
  %69 = vmatprep.subr.mxu0 0.0
  %70 = vmatpush1.msra.mxu0 0.0
  %71 = vmatprep.subr.mxu0 0.0
  %72 = vmatpush1.msra.mxu0 0.0
  %73 = vmatprep.subr.mxu0 0.0
  %74 = vmatpush1.msra.mxu0 0.0
  %75 = vmatprep.subr.mxu0 0.0
  %76 = vmatpush1.msra.mxu0 0.0
  %77 = vmatprep.subr.mxu0 0.0
  %78 = vmatpush1.msra.mxu0 0.0
  %79 = vmatprep.subr.mxu0 0.0
  %80 = vmatpush1.msra.mxu0 0.0
  %81 = vmatprep.subr.mxu0 0.0
  %82 = vmatpush1.msra.mxu0 0.0
  %83 = vmatprep.subr.mxu0 0.0
  %84 = vmatpush1.msra.mxu0 0.0
  %85 = vmatprep.subr.mxu0 0.0
  %86 = vmatpush1.msra.mxu0 0.0
  %87 = vmatprep.subr.mxu0 0.0
  %88 = vmatpush1.msra.mxu0 0.0
  %89 = vmatprep.subr.mxu0 0.0
  %90 = vmatpush1.msra.mxu0 0.0
  %91 = vmatprep.subr.mxu0 0.0
  %92 = vmatpush1.msra.mxu0 0.0
  %93 = vmatprep.subr.mxu0 0.0
  %94 = vmatpush1.msra.mxu0 0.0
  %95 = vmatprep.subr.mxu0 0.0
  %96 = vmatpush1.msra.mxu0 0.0
  %97 = vmatprep.subr.mxu0 0.0
  %98 = vmatpush1.msra.mxu0 0.0
  %99 = vmatprep.subr.mxu0 0.0
  %100 = vmatpush1.msra.mxu0 0.0
  %101 = vmatprep.subr.mxu0 0.0
  %102 = vmatpush1.msra.mxu0 0.0
  %103 = vmatprep.subr.mxu0 0.0
  %104 = vmatpush1.msra.mxu0 0.0
  %105 = vmatprep.subr.mxu0 0.0
  %106 = vmatpush1.msra.mxu0 0.0
  %107 = vmatprep.mubr.f32.mxu0 0.0
  %108 = vmatmul.mubr.f32.gmra.mrb[0].mxu0 %v38
  %v109 = vpop.f32.mrb[0].mxu0
  %v110 = vadd.f32 %v34, %v109
  %v111 = vpop.f32.mrb[0].mxu0
  %112 = vmatprep.mubr.f32.mxu0 0.0
  %113 = vmatmul.mubr.f32.gmra.mrb[0].mxu0 %v41
  %v114 = vpop.f32.mrb[0].mxu0
  %v115 = vadd.f32 %v34, %v114
  %v116 = vpop.f32.mrb[0].mxu0
  %117 = vdwg.mxu0
  %120 = vrot.lane.b32.xlu0 %v110, 120
  %v121 = vpop.permute.xlu0 %120
  %122 = vrot.lane.b32.xlu0 %v115, 120
  %v123 = vpop.permute.xlu0 %122
  %126 = vrot.lane.b32.xlu0 %v110, 112
  %v127 = vpop.permute.xlu0 %126
  %128 = vrot.lane.b32.xlu0 %v115, 112
  %v129 = vpop.permute.xlu0 %128
  %132 = vrot.lane.b32.xlu0 %v110, 104
  %v133 = vpop.permute.xlu0 %132
  %134 = vrot.lane.b32.xlu0 %v115, 104
  %v135 = vpop.permute.xlu0 %134
  %v138 = vcombine.low %v110, %v127
  %v139 = vcombine.high %v110, %v127
  %v141 = vunpack.c.l.s4 1983009808
  %v142 = vunpack.c.0.s8 %v141
  %v143 = vlaneseq
  %v144 = vshrl.u32 %v143, 7
  %v145 = vsub.s32 %v142, %v144
  %v146 = vrot.slane %v138, %v145
  %v148 = vunpack.c.l.s4 1983009808
  %v149 = vunpack.c.0.s8 %v148
  %v150 = vlaneseq
  %v151 = vshrl.u32 %v150, 7
  %v152 = vsub.s32 %v149, %v151
  %v153 = vrot.slane %v139, %v152
  %v154 = vcombine.low %v121, %v133
  %v155 = vcombine.high %v121, %v133
  %v157 = vunpack.c.l.s4 1983009808
  %v158 = vunpack.c.0.s8 %v157
  %v159 = vlaneseq
  %v160 = vshrl.u32 %v159, 7
  %v161 = vsub.s32 %v158, %v160
  %v162 = vrot.slane %v154, %v161
  %v164 = vunpack.c.l.s4 1983009808
  %v165 = vunpack.c.0.s8 %v164
  %v166 = vlaneseq
  %v167 = vshrl.u32 %v166, 7
  %v168 = vsub.s32 %v165, %v167
  %v169 = vrot.slane %v155, %v168
  %v170 = vcombine.low %v146, %v162
  %v171 = vcombine.high %v146, %v162
  %v173 = vunpack.c.l.s4 1934713408
  %v174 = vunpack.c.0.s8 %v173
  %v175 = vlaneseq
  %v176 = vshrl.u32 %v175, 7
  %v177 = vsub.s32 %v174, %v176
  %v178 = vrot.slane %v170, %v177
  %v180 = vunpack.c.l.s4 1934713408
  %v181 = vunpack.c.0.s8 %v180
  %v182 = vlaneseq
  %v183 = vshrl.u32 %v182, 7
  %v184 = vsub.s32 %v181, %v183
  %v185 = vrot.slane %v171, %v184
  %v186 = vcombine.low %v153, %v169
  %v187 = vcombine.high %v153, %v169
  %v189 = vunpack.c.l.s4 1934713408
  %v190 = vunpack.c.0.s8 %v189
  %v191 = vlaneseq
  %v192 = vshrl.u32 %v191, 7
  %v193 = vsub.s32 %v190, %v192
  %v194 = vrot.slane %v186, %v193
  %v196 = vunpack.c.l.s4 1934713408
  %v197 = vunpack.c.0.s8 %v196
  %v198 = vlaneseq
  %v199 = vshrl.u32 %v198, 7
  %v200 = vsub.s32 %v197, %v199
  %v201 = vrot.slane %v187, %v200
  %v202 = vcombine.high %v178, 0.0
  %v203 = vcombine.high %v185, 0.0
  %v204 = vcombine.high %v194, 0.0
  %v205 = vcombine.high %v201, 0.0
  %v206 = vcombine.low %v115, %v129
  %v207 = vcombine.high %v115, %v129
  %v209 = vunpack.c.l.s4 1983009808
  %v210 = vunpack.c.0.s8 %v209
  %v211 = vlaneseq
  %v212 = vshrl.u32 %v211, 7
  %v213 = vsub.s32 %v210, %v212
  %v214 = vrot.slane %v206, %v213
  %v216 = vunpack.c.l.s4 1983009808
  %v217 = vunpack.c.0.s8 %v216
  %v218 = vlaneseq
  %v219 = vshrl.u32 %v218, 7
  %v220 = vsub.s32 %v217, %v219
  %v221 = vrot.slane %v207, %v220
  %v222 = vcombine.low %v123, %v135
  %v223 = vcombine.high %v123, %v135
  %v225 = vunpack.c.l.s4 1983009808
  %v226 = vunpack.c.0.s8 %v225
  %v227 = vlaneseq
  %v228 = vshrl.u32 %v227, 7
  %v229 = vsub.s32 %v226, %v228
  %v230 = vrot.slane %v222, %v229
  %v232 = vunpack.c.l.s4 1983009808
  %v233 = vunpack.c.0.s8 %v232
  %v234 = vlaneseq
  %v235 = vshrl.u32 %v234, 7
  %v236 = vsub.s32 %v233, %v235
  %v237 = vrot.slane %v223, %v236
  %v238 = vcombine.low %v214, %v230
  %v239 = vcombine.high %v214, %v230
  %v241 = vunpack.c.l.s4 1934713408
  %v242 = vunpack.c.0.s8 %v241
  %v243 = vlaneseq
  %v244 = vshrl.u32 %v243, 7
  %v245 = vsub.s32 %v242, %v244
  %v246 = vrot.slane %v238, %v245
  %v248 = vunpack.c.l.s4 1934713408
  %v249 = vunpack.c.0.s8 %v248
  %v250 = vlaneseq
  %v251 = vshrl.u32 %v250, 7
  %v252 = vsub.s32 %v249, %v251
  %v253 = vrot.slane %v239, %v252
  %v254 = vcombine.low %v221, %v237
  %v255 = vcombine.high %v221, %v237
  %v257 = vunpack.c.l.s4 1934713408
  %v258 = vunpack.c.0.s8 %v257
  %v259 = vlaneseq
  %v260 = vshrl.u32 %v259, 7
  %v261 = vsub.s32 %v258, %v260
  %v262 = vrot.slane %v254, %v261
  %v264 = vunpack.c.l.s4 1934713408
  %v265 = vunpack.c.0.s8 %v264
  %v266 = vlaneseq
  %v267 = vshrl.u32 %v266, 7
  %v268 = vsub.s32 %v265, %v267
  %v269 = vrot.slane %v255, %v268
  %v270 = vcombine.high %v246, 0.0
  %v271 = vcombine.high %v253, 0.0
  %v272 = vcombine.high %v262, 0.0
  %v273 = vcombine.high %v269, 0.0
  %v274 = vcombine.low %v178, %v185
  %v276 = vunpack.c.l.s4 1983009808
  %v277 = vunpack.c.0.s8 %v276
  %v278 = vlaneseq
  %v279 = vshrl.u32 %v278, 7
  %v280 = vsub.s32 %v277, %v279
  %v281 = vrot.slane %v274, %v280
  %v282 = vcombine.low %v202, %v203
  %v284 = vunpack.c.l.s4 1983009808
  %v285 = vunpack.c.0.s8 %v284
  %v286 = vlaneseq
  %v287 = vshrl.u32 %v286, 7
  %v288 = vsub.s32 %v285, %v287
  %v289 = vrot.slane %v282, %v288
  %v290 = vcombine.low %v194, %v201
  %v292 = vunpack.c.l.s4 1983009808
  %v293 = vunpack.c.0.s8 %v292
  %v294 = vlaneseq
  %v295 = vshrl.u32 %v294, 7
  %v296 = vsub.s32 %v293, %v295
  %v297 = vrot.slane %v290, %v296
  %v298 = vcombine.low %v204, %v205
  %v300 = vunpack.c.l.s4 1983009808
  %v301 = vunpack.c.0.s8 %v300
  %v302 = vlaneseq
  %v303 = vshrl.u32 %v302, 7
  %v304 = vsub.s32 %v301, %v303
  %v305 = vrot.slane %v298, %v304
  %v306 = vcombine.low %v281, %v289
  %v307 = vcombine.high %v281, %v289
  %v309 = vunpack.c.l.s4 1934713408
  %v310 = vunpack.c.0.s8 %v309
  %v311 = vlaneseq
  %v312 = vshrl.u32 %v311, 7
  %v313 = vsub.s32 %v310, %v312
  %v314 = vrot.slane %v306, %v313
  %v316 = vunpack.c.l.s4 1934713408
  %v317 = vunpack.c.0.s8 %v316
  %v318 = vlaneseq
  %v319 = vshrl.u32 %v318, 7
  %v320 = vsub.s32 %v317, %v319
  %v321 = vrot.slane %v307, %v320
  %v322 = vcombine.low %v297, %v305
  %v323 = vcombine.high %v297, %v305
  %v325 = vunpack.c.l.s4 1934713408
  %v326 = vunpack.c.0.s8 %v325
  %v327 = vlaneseq
  %v328 = vshrl.u32 %v327, 7
  %v329 = vsub.s32 %v326, %v328
  %v330 = vrot.slane %v322, %v329
  %v332 = vunpack.c.l.s4 1934713408
  %v333 = vunpack.c.0.s8 %v332
  %v334 = vlaneseq
  %v335 = vshrl.u32 %v334, 7
  %v336 = vsub.s32 %v333, %v335
  %v337 = vrot.slane %v323, %v336
  %v338 = vcombine.low %v314, %v330
  %v339 = vcombine.high %v314, %v330
  %v340 = vcombine.low %v321, %v337
  %v341 = vcombine.high %v321, %v337
  %v342 = vcombine.low %v246, %v253
  %v344 = vunpack.c.l.s4 1983009808
  %v345 = vunpack.c.0.s8 %v344
  %v346 = vlaneseq
  %v347 = vshrl.u32 %v346, 7
  %v348 = vsub.s32 %v345, %v347
  %v349 = vrot.slane %v342, %v348
  %v350 = vcombine.low %v270, %v271
  %v352 = vunpack.c.l.s4 1983009808
  %v353 = vunpack.c.0.s8 %v352
  %v354 = vlaneseq
  %v355 = vshrl.u32 %v354, 7
  %v356 = vsub.s32 %v353, %v355
  %v357 = vrot.slane %v350, %v356
  %v358 = vcombine.low %v262, %v269
  %v360 = vunpack.c.l.s4 1983009808
  %v361 = vunpack.c.0.s8 %v360
  %v362 = vlaneseq
  %v363 = vshrl.u32 %v362, 7
  %v364 = vsub.s32 %v361, %v363
  %v365 = vrot.slane %v358, %v364
  %v366 = vcombine.low %v272, %v273
  %v368 = vunpack.c.l.s4 1983009808
  %v369 = vunpack.c.0.s8 %v368
  %v370 = vlaneseq
  %v371 = vshrl.u32 %v370, 7
  %v372 = vsub.s32 %v369, %v371
  %v373 = vrot.slane %v366, %v372
  %v374 = vcombine.low %v349, %v357
  %v375 = vcombine.high %v349, %v357
  %v377 = vunpack.c.l.s4 1934713408
  %v378 = vunpack.c.0.s8 %v377
  %v379 = vlaneseq
  %v380 = vshrl.u32 %v379, 7
  %v381 = vsub.s32 %v378, %v380
  %v382 = vrot.slane %v374, %v381
  %v384 = vunpack.c.l.s4 1934713408
  %v385 = vunpack.c.0.s8 %v384
  %v386 = vlaneseq
  %v387 = vshrl.u32 %v386, 7
  %v388 = vsub.s32 %v385, %v387
  %v389 = vrot.slane %v375, %v388
  %v390 = vcombine.low %v365, %v373
  %v391 = vcombine.high %v365, %v373
  %v393 = vunpack.c.l.s4 1934713408
  %v394 = vunpack.c.0.s8 %v393
  %v395 = vlaneseq
  %v396 = vshrl.u32 %v395, 7
  %v397 = vsub.s32 %v394, %v396
  %v398 = vrot.slane %v390, %v397
  %v400 = vunpack.c.l.s4 1934713408
  %v401 = vunpack.c.0.s8 %v400
  %v402 = vlaneseq
  %v403 = vshrl.u32 %v402, 7
  %v404 = vsub.s32 %v401, %v403
  %v405 = vrot.slane %v391, %v404
  %v406 = vcombine.low %v382, %v398
  %v407 = vcombine.high %v382, %v398
  %v408 = vcombine.low %v389, %v405
  %v409 = vcombine.high %v389, %v405
  %410 = vrot.lane.b32.xlu0 %v110, 96
  %v411 = vpop.permute.xlu0 %410
  %412 = vrot.lane.b32.xlu0 %v115, 96
  %v413 = vpop.permute.xlu0 %412
  %414 = vrot.lane.b32.xlu0 %v121, 96
  %v415 = vpop.permute.xlu0 %414
  %416 = vrot.lane.b32.xlu0 %v123, 96
  %v417 = vpop.permute.xlu0 %416
  %418 = vrot.lane.b32.xlu0 %v127, 96
  %v419 = vpop.permute.xlu0 %418
  %420 = vrot.lane.b32.xlu0 %v129, 96
  %v421 = vpop.permute.xlu0 %420
  %422 = vrot.lane.b32.xlu0 %v133, 96
  %v423 = vpop.permute.xlu0 %422
  %424 = vrot.lane.b32.xlu0 %v135, 96
  %v425 = vpop.permute.xlu0 %424
  %v434 = vcombine.low %v411, %v419
  %v435 = vcombine.high %v411, %v419
  %v437 = vunpack.c.l.s4 1983009808
  %v438 = vunpack.c.0.s8 %v437
  %v439 = vlaneseq
  %v440 = vshrl.u32 %v439, 7
  %v441 = vsub.s32 %v438, %v440
  %v442 = vrot.slane %v434, %v441
  %v444 = vunpack.c.l.s4 1983009808
  %v445 = vunpack.c.0.s8 %v444
  %v446 = vlaneseq
  %v447 = vshrl.u32 %v446, 7
  %v448 = vsub.s32 %v445, %v447
  %v449 = vrot.slane %v435, %v448
  %v450 = vcombine.low %v415, %v423
  %v451 = vcombine.high %v415, %v423
  %v453 = vunpack.c.l.s4 1983009808
  %v454 = vunpack.c.0.s8 %v453
  %v455 = vlaneseq
  %v456 = vshrl.u32 %v455, 7
  %v457 = vsub.s32 %v454, %v456
  %v458 = vrot.slane %v450, %v457
  %v460 = vunpack.c.l.s4 1983009808
  %v461 = vunpack.c.0.s8 %v460
  %v462 = vlaneseq
  %v463 = vshrl.u32 %v462, 7
  %v464 = vsub.s32 %v461, %v463
  %v465 = vrot.slane %v451, %v464
  %v466 = vcombine.low %v442, %v458
  %v467 = vcombine.high %v442, %v458
  %v469 = vunpack.c.l.s4 1934713408
  %v470 = vunpack.c.0.s8 %v469
  %v471 = vlaneseq
  %v472 = vshrl.u32 %v471, 7
  %v473 = vsub.s32 %v470, %v472
  %v474 = vrot.slane %v466, %v473
  %v476 = vunpack.c.l.s4 1934713408
  %v477 = vunpack.c.0.s8 %v476
  %v478 = vlaneseq
  %v479 = vshrl.u32 %v478, 7
  %v480 = vsub.s32 %v477, %v479
  %v481 = vrot.slane %v467, %v480
  %v482 = vcombine.low %v449, %v465
  %v483 = vcombine.high %v449, %v465
  %v485 = vunpack.c.l.s4 1934713408
  %v486 = vunpack.c.0.s8 %v485
  %v487 = vlaneseq
  %v488 = vshrl.u32 %v487, 7
  %v489 = vsub.s32 %v486, %v488
  %v490 = vrot.slane %v482, %v489
  %v492 = vunpack.c.l.s4 1934713408
  %v493 = vunpack.c.0.s8 %v492
  %v494 = vlaneseq
  %v495 = vshrl.u32 %v494, 7
  %v496 = vsub.s32 %v493, %v495
  %v497 = vrot.slane %v483, %v496
  %v498 = vcombine.high %v474, 0.0
  %v499 = vcombine.high %v481, 0.0
  %v500 = vcombine.high %v490, 0.0
  %v501 = vcombine.high %v497, 0.0
  %v502 = vcombine.low %v413, %v421
  %v503 = vcombine.high %v413, %v421
  %v505 = vunpack.c.l.s4 1983009808
  %v506 = vunpack.c.0.s8 %v505
  %v507 = vlaneseq
  %v508 = vshrl.u32 %v507, 7
  %v509 = vsub.s32 %v506, %v508
  %v510 = vrot.slane %v502, %v509
  %v512 = vunpack.c.l.s4 1983009808
  %v513 = vunpack.c.0.s8 %v512
  %v514 = vlaneseq
  %v515 = vshrl.u32 %v514, 7
  %v516 = vsub.s32 %v513, %v515
  %v517 = vrot.slane %v503, %v516
  %v518 = vcombine.low %v417, %v425
  %v519 = vcombine.high %v417, %v425
  %v521 = vunpack.c.l.s4 1983009808
  %v522 = vunpack.c.0.s8 %v521
  %v523 = vlaneseq
  %v524 = vshrl.u32 %v523, 7
  %v525 = vsub.s32 %v522, %v524
  %v526 = vrot.slane %v518, %v525
  %v528 = vunpack.c.l.s4 1983009808
  %v529 = vunpack.c.0.s8 %v528
  %v530 = vlaneseq
  %v531 = vshrl.u32 %v530, 7
  %v532 = vsub.s32 %v529, %v531
  %v533 = vrot.slane %v519, %v532
  %v534 = vcombine.low %v510, %v526
  %v535 = vcombine.high %v510, %v526
  %v537 = vunpack.c.l.s4 1934713408
  %v538 = vunpack.c.0.s8 %v537
  %v539 = vlaneseq
  %v540 = vshrl.u32 %v539, 7
  %v541 = vsub.s32 %v538, %v540
  %v542 = vrot.slane %v534, %v541
  %v544 = vunpack.c.l.s4 1934713408
  %v545 = vunpack.c.0.s8 %v544
  %v546 = vlaneseq
  %v547 = vshrl.u32 %v546, 7
  %v548 = vsub.s32 %v545, %v547
  %v549 = vrot.slane %v535, %v548
  %v550 = vcombine.low %v517, %v533
  %v551 = vcombine.high %v517, %v533
  %v553 = vunpack.c.l.s4 1934713408
  %v554 = vunpack.c.0.s8 %v553
  %v555 = vlaneseq
  %v556 = vshrl.u32 %v555, 7
  %v557 = vsub.s32 %v554, %v556
  %v558 = vrot.slane %v550, %v557
  %v560 = vunpack.c.l.s4 1934713408
  %v561 = vunpack.c.0.s8 %v560
  %v562 = vlaneseq
  %v563 = vshrl.u32 %v562, 7
  %v564 = vsub.s32 %v561, %v563
  %v565 = vrot.slane %v551, %v564
  %v566 = vcombine.high %v542, 0.0
  %v567 = vcombine.high %v549, 0.0
  %v568 = vcombine.high %v558, 0.0
  %v569 = vcombine.high %v565, 0.0
  %v570 = vcombine.low %v474, %v481
  %v572 = vunpack.c.l.s4 1983009808
  %v573 = vunpack.c.0.s8 %v572
  %v574 = vlaneseq
  %v575 = vshrl.u32 %v574, 7
  %v576 = vsub.s32 %v573, %v575
  %v577 = vrot.slane %v570, %v576
  %v578 = vcombine.low %v498, %v499
  %v580 = vunpack.c.l.s4 1983009808
  %v581 = vunpack.c.0.s8 %v580
  %v582 = vlaneseq
  %v583 = vshrl.u32 %v582, 7
  %v584 = vsub.s32 %v581, %v583
  %v585 = vrot.slane %v578, %v584
  %v586 = vcombine.low %v490, %v497
  %v588 = vunpack.c.l.s4 1983009808
  %v589 = vunpack.c.0.s8 %v588
  %v590 = vlaneseq
  %v591 = vshrl.u32 %v590, 7
  %v592 = vsub.s32 %v589, %v591
  %v593 = vrot.slane %v586, %v592
  %v594 = vcombine.low %v500, %v501
  %v596 = vunpack.c.l.s4 1983009808
  %v597 = vunpack.c.0.s8 %v596
  %v598 = vlaneseq
  %v599 = vshrl.u32 %v598, 7
  %v600 = vsub.s32 %v597, %v599
  %v601 = vrot.slane %v594, %v600
  %v602 = vcombine.low %v577, %v585
  %v603 = vcombine.high %v577, %v585
  %v605 = vunpack.c.l.s4 1934713408
  %v606 = vunpack.c.0.s8 %v605
  %v607 = vlaneseq
  %v608 = vshrl.u32 %v607, 7
  %v609 = vsub.s32 %v606, %v608
  %v610 = vrot.slane %v602, %v609
  %v612 = vunpack.c.l.s4 1934713408
  %v613 = vunpack.c.0.s8 %v612
  %v614 = vlaneseq
  %v615 = vshrl.u32 %v614, 7
  %v616 = vsub.s32 %v613, %v615
  %v617 = vrot.slane %v603, %v616
  %v618 = vcombine.low %v593, %v601
  %v619 = vcombine.high %v593, %v601
  %v621 = vunpack.c.l.s4 1934713408
  %v622 = vunpack.c.0.s8 %v621
  %v623 = vlaneseq
  %v624 = vshrl.u32 %v623, 7
  %v625 = vsub.s32 %v622, %v624
  %v626 = vrot.slane %v618, %v625
  %v628 = vunpack.c.l.s4 1934713408
  %v629 = vunpack.c.0.s8 %v628
  %v630 = vlaneseq
  %v631 = vshrl.u32 %v630, 7
  %v632 = vsub.s32 %v629, %v631
  %v633 = vrot.slane %v619, %v632
  %v634 = vcombine.low %v610, %v626
  %v635 = vcombine.high %v610, %v626
  %v636 = vcombine.low %v617, %v633
  %v637 = vcombine.high %v617, %v633
  %v638 = vcombine.low %v542, %v549
  %v640 = vunpack.c.l.s4 1983009808
  %v641 = vunpack.c.0.s8 %v640
  %v642 = vlaneseq
  %v643 = vshrl.u32 %v642, 7
  %v644 = vsub.s32 %v641, %v643
  %v645 = vrot.slane %v638, %v644
  %v646 = vcombine.low %v566, %v567
  %v648 = vunpack.c.l.s4 1983009808
  %v649 = vunpack.c.0.s8 %v648
  %v650 = vlaneseq
  %v651 = vshrl.u32 %v650, 7
  %v652 = vsub.s32 %v649, %v651
  %v653 = vrot.slane %v646, %v652
  %v654 = vcombine.low %v558, %v565
  %v656 = vunpack.c.l.s4 1983009808
  %v657 = vunpack.c.0.s8 %v656
  %v658 = vlaneseq
  %v659 = vshrl.u32 %v658, 7
  %v660 = vsub.s32 %v657, %v659
  %v661 = vrot.slane %v654, %v660
  %v662 = vcombine.low %v568, %v569
  %v664 = vunpack.c.l.s4 1983009808
  %v665 = vunpack.c.0.s8 %v664
  %v666 = vlaneseq
  %v667 = vshrl.u32 %v666, 7
  %v668 = vsub.s32 %v665, %v667
  %v669 = vrot.slane %v662, %v668
  %v670 = vcombine.low %v645, %v653
  %v671 = vcombine.high %v645, %v653
  %v673 = vunpack.c.l.s4 1934713408
  %v674 = vunpack.c.0.s8 %v673
  %v675 = vlaneseq
  %v676 = vshrl.u32 %v675, 7
  %v677 = vsub.s32 %v674, %v676
  %v678 = vrot.slane %v670, %v677
  %v680 = vunpack.c.l.s4 1934713408
  %v681 = vunpack.c.0.s8 %v680
  %v682 = vlaneseq
  %v683 = vshrl.u32 %v682, 7
  %v684 = vsub.s32 %v681, %v683
  %v685 = vrot.slane %v671, %v684
  %v686 = vcombine.low %v661, %v669
  %v687 = vcombine.high %v661, %v669
  %v689 = vunpack.c.l.s4 1934713408
  %v690 = vunpack.c.0.s8 %v689
  %v691 = vlaneseq
  %v692 = vshrl.u32 %v691, 7
  %v693 = vsub.s32 %v690, %v692
  %v694 = vrot.slane %v686, %v693
  %v696 = vunpack.c.l.s4 1934713408
  %v697 = vunpack.c.0.s8 %v696
  %v698 = vlaneseq
  %v699 = vshrl.u32 %v698, 7
  %v700 = vsub.s32 %v697, %v699
  %v701 = vrot.slane %v687, %v700
  %v702 = vcombine.low %v678, %v694
  %v703 = vcombine.high %v678, %v694
  %v704 = vcombine.low %v685, %v701
  %v705 = vcombine.high %v685, %v701
  %706 = vrot.lane.b32.xlu0 %v110, 64
  %v707 = vpop.permute.xlu0 %706
  %708 = vrot.lane.b32.xlu0 %v115, 64
  %v709 = vpop.permute.xlu0 %708
  %710 = vrot.lane.b32.xlu0 %v121, 64
  %v711 = vpop.permute.xlu0 %710
  %712 = vrot.lane.b32.xlu0 %v123, 64
  %v713 = vpop.permute.xlu0 %712
  %714 = vrot.lane.b32.xlu0 %v127, 64
  %v715 = vpop.permute.xlu0 %714
  %716 = vrot.lane.b32.xlu0 %v129, 64
  %v717 = vpop.permute.xlu0 %716
  %718 = vrot.lane.b32.xlu0 %v133, 64
  %v719 = vpop.permute.xlu0 %718
  %720 = vrot.lane.b32.xlu0 %v135, 64
  %v721 = vpop.permute.xlu0 %720
  %v730 = vcombine.low %v707, %v715
  %v731 = vcombine.high %v707, %v715
  %v733 = vunpack.c.l.s4 1983009808
  %v734 = vunpack.c.0.s8 %v733
  %v735 = vlaneseq
  %v736 = vshrl.u32 %v735, 7
  %v737 = vsub.s32 %v734, %v736
  %v738 = vrot.slane %v730, %v737
  %v740 = vunpack.c.l.s4 1983009808
  %v741 = vunpack.c.0.s8 %v740
  %v742 = vlaneseq
  %v743 = vshrl.u32 %v742, 7
  %v744 = vsub.s32 %v741, %v743
  %v745 = vrot.slane %v731, %v744
  %v746 = vcombine.low %v711, %v719
  %v747 = vcombine.high %v711, %v719
  %v749 = vunpack.c.l.s4 1983009808
  %v750 = vunpack.c.0.s8 %v749
  %v751 = vlaneseq
  %v752 = vshrl.u32 %v751, 7
  %v753 = vsub.s32 %v750, %v752
  %v754 = vrot.slane %v746, %v753
  %v756 = vunpack.c.l.s4 1983009808
  %v757 = vunpack.c.0.s8 %v756
  %v758 = vlaneseq
  %v759 = vshrl.u32 %v758, 7
  %v760 = vsub.s32 %v757, %v759
  %v761 = vrot.slane %v747, %v760
  %v762 = vcombine.low %v738, %v754
  %v763 = vcombine.high %v738, %v754
  %v765 = vunpack.c.l.s4 1934713408
  %v766 = vunpack.c.0.s8 %v765
  %v767 = vlaneseq
  %v768 = vshrl.u32 %v767, 7
  %v769 = vsub.s32 %v766, %v768
  %v770 = vrot.slane %v762, %v769
  %v772 = vunpack.c.l.s4 1934713408
  %v773 = vunpack.c.0.s8 %v772
  %v774 = vlaneseq
  %v775 = vshrl.u32 %v774, 7
  %v776 = vsub.s32 %v773, %v775
  %v777 = vrot.slane %v763, %v776
  %v778 = vcombine.low %v745, %v761
  %v779 = vcombine.high %v745, %v761
  %v781 = vunpack.c.l.s4 1934713408
  %v782 = vunpack.c.0.s8 %v781
  %v783 = vlaneseq
  %v784 = vshrl.u32 %v783, 7
  %v785 = vsub.s32 %v782, %v784
  %v786 = vrot.slane %v778, %v785
  %v788 = vunpack.c.l.s4 1934713408
  %v789 = vunpack.c.0.s8 %v788
  %v790 = vlaneseq
  %v791 = vshrl.u32 %v790, 7
  %v792 = vsub.s32 %v789, %v791
  %v793 = vrot.slane %v779, %v792
  %v794 = vcombine.high %v770, 0.0
  %v795 = vcombine.high %v777, 0.0
  %v796 = vcombine.high %v786, 0.0
  %v797 = vcombine.high %v793, 0.0
  %v798 = vcombine.low %v709, %v717
  %v799 = vcombine.high %v709, %v717
  %v801 = vunpack.c.l.s4 1983009808
  %v802 = vunpack.c.0.s8 %v801
  %v803 = vlaneseq
  %v804 = vshrl.u32 %v803, 7
  %v805 = vsub.s32 %v802, %v804
  %v806 = vrot.slane %v798, %v805
  %v808 = vunpack.c.l.s4 1983009808
  %v809 = vunpack.c.0.s8 %v808
  %v810 = vlaneseq
  %v811 = vshrl.u32 %v810, 7
  %v812 = vsub.s32 %v809, %v811
  %v813 = vrot.slane %v799, %v812
  %v814 = vcombine.low %v713, %v721
  %v815 = vcombine.high %v713, %v721
  %v817 = vunpack.c.l.s4 1983009808
  %v818 = vunpack.c.0.s8 %v817
  %v819 = vlaneseq
  %v820 = vshrl.u32 %v819, 7
  %v821 = vsub.s32 %v818, %v820
  %v822 = vrot.slane %v814, %v821
  %v824 = vunpack.c.l.s4 1983009808
  %v825 = vunpack.c.0.s8 %v824
  %v826 = vlaneseq
  %v827 = vshrl.u32 %v826, 7
  %v828 = vsub.s32 %v825, %v827
  %v829 = vrot.slane %v815, %v828
  %v830 = vcombine.low %v806, %v822
  %v831 = vcombine.high %v806, %v822
  %v833 = vunpack.c.l.s4 1934713408
  %v834 = vunpack.c.0.s8 %v833
  %v835 = vlaneseq
  %v836 = vshrl.u32 %v835, 7
  %v837 = vsub.s32 %v834, %v836
  %v838 = vrot.slane %v830, %v837
  %v840 = vunpack.c.l.s4 1934713408
  %v841 = vunpack.c.0.s8 %v840
  %v842 = vlaneseq
  %v843 = vshrl.u32 %v842, 7
  %v844 = vsub.s32 %v841, %v843
  %v845 = vrot.slane %v831, %v844
  %v846 = vcombine.low %v813, %v829
  %v847 = vcombine.high %v813, %v829
  %v849 = vunpack.c.l.s4 1934713408
  %v850 = vunpack.c.0.s8 %v849
  %v851 = vlaneseq
  %v852 = vshrl.u32 %v851, 7
  %v853 = vsub.s32 %v850, %v852
  %v854 = vrot.slane %v846, %v853
  %v856 = vunpack.c.l.s4 1934713408
  %v857 = vunpack.c.0.s8 %v856
  %v858 = vlaneseq
  %v859 = vshrl.u32 %v858, 7
  %v860 = vsub.s32 %v857, %v859
  %v861 = vrot.slane %v847, %v860
  %v862 = vcombine.high %v838, 0.0
  %v863 = vcombine.high %v845, 0.0
  %v864 = vcombine.high %v854, 0.0
  %v865 = vcombine.high %v861, 0.0
  %v866 = vcombine.low %v770, %v777
  %v868 = vunpack.c.l.s4 1983009808
  %v869 = vunpack.c.0.s8 %v868
  %v870 = vlaneseq
  %v871 = vshrl.u32 %v870, 7
  %v872 = vsub.s32 %v869, %v871
  %v873 = vrot.slane %v866, %v872
  %v874 = vcombine.low %v794, %v795
  %v876 = vunpack.c.l.s4 1983009808
  %v877 = vunpack.c.0.s8 %v876
  %v878 = vlaneseq
  %v879 = vshrl.u32 %v878, 7
  %v880 = vsub.s32 %v877, %v879
  %v881 = vrot.slane %v874, %v880
  %v882 = vcombine.low %v786, %v793
  %v884 = vunpack.c.l.s4 1983009808
  %v885 = vunpack.c.0.s8 %v884
  %v886 = vlaneseq
  %v887 = vshrl.u32 %v886, 7
  %v888 = vsub.s32 %v885, %v887
  %v889 = vrot.slane %v882, %v888
  %v890 = vcombine.low %v796, %v797
  %v892 = vunpack.c.l.s4 1983009808
  %v893 = vunpack.c.0.s8 %v892
  %v894 = vlaneseq
  %v895 = vshrl.u32 %v894, 7
  %v896 = vsub.s32 %v893, %v895
  %v897 = vrot.slane %v890, %v896
  %v898 = vcombine.low %v873, %v881
  %v899 = vcombine.high %v873, %v881
  %v901 = vunpack.c.l.s4 1934713408
  %v902 = vunpack.c.0.s8 %v901
  %v903 = vlaneseq
  %v904 = vshrl.u32 %v903, 7
  %v905 = vsub.s32 %v902, %v904
  %v906 = vrot.slane %v898, %v905
  %v908 = vunpack.c.l.s4 1934713408
  %v909 = vunpack.c.0.s8 %v908
  %v910 = vlaneseq
  %v911 = vshrl.u32 %v910, 7
  %v912 = vsub.s32 %v909, %v911
  %v913 = vrot.slane %v899, %v912
  %v914 = vcombine.low %v889, %v897
  %v915 = vcombine.high %v889, %v897
  %v917 = vunpack.c.l.s4 1934713408
  %v918 = vunpack.c.0.s8 %v917
  %v919 = vlaneseq
  %v920 = vshrl.u32 %v919, 7
  %v921 = vsub.s32 %v918, %v920
  %v922 = vrot.slane %v914, %v921
  %v924 = vunpack.c.l.s4 1934713408
  %v925 = vunpack.c.0.s8 %v924
  %v926 = vlaneseq
  %v927 = vshrl.u32 %v926, 7
  %v928 = vsub.s32 %v925, %v927
  %v929 = vrot.slane %v915, %v928
  %v930 = vcombine.low %v906, %v922
  %v931 = vcombine.high %v906, %v922
  %v932 = vcombine.low %v913, %v929
  %v933 = vcombine.high %v913, %v929
  %v934 = vcombine.low %v838, %v845
  %v936 = vunpack.c.l.s4 1983009808
  %v937 = vunpack.c.0.s8 %v936
  %v938 = vlaneseq
  %v939 = vshrl.u32 %v938, 7
  %v940 = vsub.s32 %v937, %v939
  %v941 = vrot.slane %v934, %v940
  %v942 = vcombine.low %v862, %v863
  %v944 = vunpack.c.l.s4 1983009808
  %v945 = vunpack.c.0.s8 %v944
  %v946 = vlaneseq
  %v947 = vshrl.u32 %v946, 7
  %v948 = vsub.s32 %v945, %v947
  %v949 = vrot.slane %v942, %v948
  %v950 = vcombine.low %v854, %v861
  %v952 = vunpack.c.l.s4 1983009808
  %v953 = vunpack.c.0.s8 %v952
  %v954 = vlaneseq
  %v955 = vshrl.u32 %v954, 7
  %v956 = vsub.s32 %v953, %v955
  %v957 = vrot.slane %v950, %v956
  %v958 = vcombine.low %v864, %v865
  %v960 = vunpack.c.l.s4 1983009808
  %v961 = vunpack.c.0.s8 %v960
  %v962 = vlaneseq
  %v963 = vshrl.u32 %v962, 7
  %v964 = vsub.s32 %v961, %v963
  %v965 = vrot.slane %v958, %v964
  %v966 = vcombine.low %v941, %v949
  %v967 = vcombine.high %v941, %v949
  %v969 = vunpack.c.l.s4 1934713408
  %v970 = vunpack.c.0.s8 %v969
  %v971 = vlaneseq
  %v972 = vshrl.u32 %v971, 7
  %v973 = vsub.s32 %v970, %v972
  %v974 = vrot.slane %v966, %v973
  %v976 = vunpack.c.l.s4 1934713408
  %v977 = vunpack.c.0.s8 %v976
  %v978 = vlaneseq
  %v979 = vshrl.u32 %v978, 7
  %v980 = vsub.s32 %v977, %v979
  %v981 = vrot.slane %v967, %v980
  %v982 = vcombine.low %v957, %v965
  %v983 = vcombine.high %v957, %v965
  %v985 = vunpack.c.l.s4 1934713408
  %v986 = vunpack.c.0.s8 %v985
  %v987 = vlaneseq
  %v988 = vshrl.u32 %v987, 7
  %v989 = vsub.s32 %v986, %v988
  %v990 = vrot.slane %v982, %v989
  %v992 = vunpack.c.l.s4 1934713408
  %v993 = vunpack.c.0.s8 %v992
  %v994 = vlaneseq
  %v995 = vshrl.u32 %v994, 7
  %v996 = vsub.s32 %v993, %v995
  %v997 = vrot.slane %v983, %v996
  %v998 = vcombine.low %v974, %v990
  %v999 = vcombine.high %v974, %v990
  %v1000 = vcombine.low %v981, %v997
  %v1001 = vcombine.high %v981, %v997
  %v1002 = vld [vmem:[%s5] sm:$0xff]
  %v1003 = vld [vmem:[%s5 + $0x8] sm:$0xff]
  %vm1004 = vcmask 64512
  %v1006 = vsel %vm1004, %v338, 0
  %v1009 = vsel %vm1004, %v406, 0
  %v1012 = vsel %vm1004, %v634, 0
  %v1015 = vsel %vm1004, %v702, 0
  %1017 = vmatprep.subr.mxu0 0.0
  %1018 = vmatpush1.xpose.msra.mxu0 %v1012
  %1019 = vmatprep.subr.mxu0 0.0
  %1020 = vmatpush1.xpose.msra.mxu0 %v1015
  %1021 = vmatprep.subr.mxu0 0.0
  %1022 = vmatpush1.xpose.msra.mxu0 0.0
  %1023 = vmatprep.subr.mxu0 0.0
  %1024 = vmatpush1.xpose.msra.mxu0 0.0
  %1025 = vmatprep.subr.mxu0 0.0
  %1026 = vmatpush1.xpose.msra.mxu0 0.0
  %1027 = vmatprep.subr.mxu0 0.0
  %1028 = vmatpush1.xpose.msra.mxu0 0.0
  %1029 = vmatprep.subr.mxu0 0.0
  %1030 = vmatpush1.xpose.msra.mxu0 0.0
  %1031 = vmatprep.subr.mxu0 0.0
  %1032 = vmatpush1.xpose.msra.mxu0 0.0
  %1033 = vmatprep.subr.mxu0 0.0
  %1034 = vmatpush1.xpose.msra.mxu0 0.0
  %1035 = vmatprep.subr.mxu0 0.0
  %1036 = vmatpush1.xpose.msra.mxu0 0.0
  %1037 = vmatprep.subr.mxu0 0.0
  %1038 = vmatpush1.xpose.msra.mxu0 0.0
  %1039 = vmatprep.subr.mxu0 0.0
  %1040 = vmatpush1.xpose.msra.mxu0 0.0
  %1041 = vmatprep.subr.mxu0 0.0
  %1042 = vmatpush1.xpose.msra.mxu0 0.0
  %1043 = vmatprep.subr.mxu0 0.0
  %1044 = vmatpush1.xpose.msra.mxu0 0.0
  %1045 = vmatprep.subr.mxu0 0.0
  %1046 = vmatpush1.xpose.msra.mxu0 0.0
  %1047 = vmatprep.subr.mxu0 0.0
  %1048 = vmatpush1.xpose.msra.mxu0 0.0
  %1049 = vmatprep.subr.mxu0 0.0
  %1050 = vmatpush1.xpose.msra.mxu0 0.0
  %1051 = vmatprep.subr.mxu0 0.0
  %1052 = vmatpush1.xpose.msra.mxu0 0.0
  %1053 = vmatprep.subr.mxu0 0.0
  %1054 = vmatpush1.xpose.msra.mxu0 0.0
  %1055 = vmatprep.subr.mxu0 0.0
  %1056 = vmatpush1.xpose.msra.mxu0 0.0
  %1057 = vmatprep.subr.mxu0 0.0
  %1058 = vmatpush1.xpose.msra.mxu0 0.0
  %1059 = vmatprep.subr.mxu0 0.0
  %1060 = vmatpush1.xpose.msra.mxu0 0.0
  %1061 = vmatprep.subr.mxu0 0.0
  %1062 = vmatpush1.xpose.msra.mxu0 0.0
  %1063 = vmatprep.subr.mxu0 0.0
  %1064 = vmatpush1.xpose.msra.mxu0 0.0
  %1065 = vmatprep.subr.mxu0 0.0
  %1066 = vmatpush1.xpose.msra.mxu0 0.0
  %1067 = vmatprep.subr.mxu0 0.0
  %1068 = vmatpush1.xpose.msra.mxu0 0.0
  %1069 = vmatprep.subr.mxu0 0.0
  %1070 = vmatpush1.xpose.msra.mxu0 0.0
  %1071 = vmatprep.subr.mxu0 0.0
  %1072 = vmatpush1.xpose.msra.mxu0 0.0
  %1073 = vmatprep.subr.mxu0 0.0
  %1074 = vmatpush1.xpose.msra.mxu0 0.0
  %1075 = vmatprep.subr.mxu0 0.0
  %1076 = vmatpush1.xpose.msra.mxu0 0.0
  %1077 = vmatprep.subr.mxu0 0.0
  %1078 = vmatpush1.xpose.msra.mxu0 0.0
  %1079 = vmatprep.subr.mxu0 0.0
  %1080 = vmatpush1.xpose.msra.mxu0 0.0
  %1081 = vmatprep.mubr.f32.mxu0 0.0
  %1082 = vmatmul.mubr.f32.gmra.mrb[0].mxu0 %v1006
  %v1083 = vpop.f32.mrb[0].mxu0
  %v1084 = vadd.f32 %v1002, %v1083
  %v1085 = vpop.f32.mrb[0].mxu0
  %1086 = vmatprep.mubr.f32.mxu0 0.0
  %1087 = vmatmul.mubr.f32.gmra.mrb[0].mxu0 %v1009
  %v1088 = vpop.f32.mrb[0].mxu0
  %v1089 = vadd.f32 %v1003, %v1088
  %v1090 = vpop.f32.mrb[0].mxu0
  %1091 = vdwg.mxu0
  %v1093 = vsel %vm1004, %v339, 0
  %v1096 = vsel %vm1004, %v407, 0
  %v1099 = vsel %vm1004, %v635, 0
  %v1102 = vsel %vm1004, %v703, 0
  %1104 = vmatprep.subr.mxu0 0.0
  %1105 = vmatpush1.xpose.msra.mxu0 %v1099
  %1106 = vmatprep.subr.mxu0 0.0
  %1107 = vmatpush1.xpose.msra.mxu0 %v1102
  %1108 = vmatprep.subr.mxu0 0.0
  %1109 = vmatpush1.xpose.msra.mxu0 0.0
  %1110 = vmatprep.subr.mxu0 0.0
  %1111 = vmatpush1.xpose.msra.mxu0 0.0
  %1112 = vmatprep.subr.mxu0 0.0
  %1113 = vmatpush1.xpose.msra.mxu0 0.0
  %1114 = vmatprep.subr.mxu0 0.0
  %1115 = vmatpush1.xpose.msra.mxu0 0.0
  %1116 = vmatprep.subr.mxu0 0.0
  %1117 = vmatpush1.xpose.msra.mxu0 0.0
  %1118 = vmatprep.subr.mxu0 0.0
  %1119 = vmatpush1.xpose.msra.mxu0 0.0
  %1120 = vmatprep.subr.mxu0 0.0
  %1121 = vmatpush1.xpose.msra.mxu0 0.0
  %1122 = vmatprep.subr.mxu0 0.0
  %1123 = vmatpush1.xpose.msra.mxu0 0.0
  %1124 = vmatprep.subr.mxu0 0.0
  %1125 = vmatpush1.xpose.msra.mxu0 0.0
  %1126 = vmatprep.subr.mxu0 0.0
  %1127 = vmatpush1.xpose.msra.mxu0 0.0
  %1128 = vmatprep.subr.mxu0 0.0
  %1129 = vmatpush1.xpose.msra.mxu0 0.0
  %1130 = vmatprep.subr.mxu0 0.0
  %1131 = vmatpush1.xpose.msra.mxu0 0.0
  %1132 = vmatprep.subr.mxu0 0.0
  %1133 = vmatpush1.xpose.msra.mxu0 0.0
  %1134 = vmatprep.subr.mxu0 0.0
  %1135 = vmatpush1.xpose.msra.mxu0 0.0
  %1136 = vmatprep.subr.mxu0 0.0
  %1137 = vmatpush1.xpose.msra.mxu0 0.0
  %1138 = vmatprep.subr.mxu0 0.0
  %1139 = vmatpush1.xpose.msra.mxu0 0.0
  %1140 = vmatprep.subr.mxu0 0.0
  %1141 = vmatpush1.xpose.msra.mxu0 0.0
  %1142 = vmatprep.subr.mxu0 0.0
  %1143 = vmatpush1.xpose.msra.mxu0 0.0
  %1144 = vmatprep.subr.mxu0 0.0
  %1145 = vmatpush1.xpose.msra.mxu0 0.0
  %1146 = vmatprep.subr.mxu0 0.0
  %1147 = vmatpush1.xpose.msra.mxu0 0.0
  %1148 = vmatprep.subr.mxu0 0.0
  %1149 = vmatpush1.xpose.msra.mxu0 0.0
  %1150 = vmatprep.subr.mxu0 0.0
  %1151 = vmatpush1.xpose.msra.mxu0 0.0
  %1152 = vmatprep.subr.mxu0 0.0
  %1153 = vmatpush1.xpose.msra.mxu0 0.0
  %1154 = vmatprep.subr.mxu0 0.0
  %1155 = vmatpush1.xpose.msra.mxu0 0.0
  %1156 = vmatprep.subr.mxu0 0.0
  %1157 = vmatpush1.xpose.msra.mxu0 0.0
  %1158 = vmatprep.subr.mxu0 0.0
  %1159 = vmatpush1.xpose.msra.mxu0 0.0
  %1160 = vmatprep.subr.mxu0 0.0
  %1161 = vmatpush1.xpose.msra.mxu0 0.0
  %1162 = vmatprep.subr.mxu0 0.0
  %1163 = vmatpush1.xpose.msra.mxu0 0.0
  %1164 = vmatprep.subr.mxu0 0.0
  %1165 = vmatpush1.xpose.msra.mxu0 0.0
  %1166 = vmatprep.subr.mxu0 0.0
  %1167 = vmatpush1.xpose.msra.mxu0 0.0
  %1168 = vmatprep.mubr.f32.mxu0 0.0
  %1169 = vmatmul.mubr.f32.gmra.mrb[0].mxu0 %v1093
  %v1170 = vpop.f32.mrb[0].mxu0
  %v1171 = vadd.f32 %v1002, %v1170
  %v1172 = vpop.f32.mrb[0].mxu0
  %1173 = vmatprep.mubr.f32.mxu0 0.0
  %1174 = vmatmul.mubr.f32.gmra.mrb[0].mxu0 %v1096
  %v1175 = vpop.f32.mrb[0].mxu0
  %v1176 = vadd.f32 %v1003, %v1175
  %v1177 = vpop.f32.mrb[0].mxu0
  %1178 = vdwg.mxu0
  %v1180 = vsel %vm1004, %v340, 0
  %v1183 = vsel %vm1004, %v408, 0
  %v1186 = vsel %vm1004, %v636, 0
  %v1189 = vsel %vm1004, %v704, 0
  %1191 = vmatprep.subr.mxu0 0.0
  %1192 = vmatpush1.xpose.msra.mxu0 %v1186
  %1193 = vmatprep.subr.mxu0 0.0
  %1194 = vmatpush1.xpose.msra.mxu0 %v1189
  %1195 = vmatprep.subr.mxu0 0.0
  %1196 = vmatpush1.xpose.msra.mxu0 0.0
  %1197 = vmatprep.subr.mxu0 0.0
  %1198 = vmatpush1.xpose.msra.mxu0 0.0
  %1199 = vmatprep.subr.mxu0 0.0
  %1200 = vmatpush1.xpose.msra.mxu0 0.0
  %1201 = vmatprep.subr.mxu0 0.0
  %1202 = vmatpush1.xpose.msra.mxu0 0.0
  %1203 = vmatprep.subr.mxu0 0.0
  %1204 = vmatpush1.xpose.msra.mxu0 0.0
  %1205 = vmatprep.subr.mxu0 0.0
  %1206 = vmatpush1.xpose.msra.mxu0 0.0
  %1207 = vmatprep.subr.mxu0 0.0
  %1208 = vmatpush1.xpose.msra.mxu0 0.0
  %1209 = vmatprep.subr.mxu0 0.0
  %1210 = vmatpush1.xpose.msra.mxu0 0.0
  %1211 = vmatprep.subr.mxu0 0.0
  %1212 = vmatpush1.xpose.msra.mxu0 0.0
  %1213 = vmatprep.subr.mxu0 0.0
  %1214 = vmatpush1.xpose.msra.mxu0 0.0
  %1215 = vmatprep.subr.mxu0 0.0
  %1216 = vmatpush1.xpose.msra.mxu0 0.0
  %1217 = vmatprep.subr.mxu0 0.0
  %1218 = vmatpush1.xpose.msra.mxu0 0.0
  %1219 = vmatprep.subr.mxu0 0.0
  %1220 = vmatpush1.xpose.msra.mxu0 0.0
  %1221 = vmatprep.subr.mxu0 0.0
  %1222 = vmatpush1.xpose.msra.mxu0 0.0
  %1223 = vmatprep.subr.mxu0 0.0
  %1224 = vmatpush1.xpose.msra.mxu0 0.0
  %1225 = vmatprep.subr.mxu0 0.0
  %1226 = vmatpush1.xpose.msra.mxu0 0.0
  %1227 = vmatprep.subr.mxu0 0.0
  %1228 = vmatpush1.xpose.msra.mxu0 0.0
  %1229 = vmatprep.subr.mxu0 0.0
  %1230 = vmatpush1.xpose.msra.mxu0 0.0
  %1231 = vmatprep.subr.mxu0 0.0
  %1232 = vmatpush1.xpose.msra.mxu0 0.0
  %1233 = vmatprep.subr.mxu0 0.0
  %1234 = vmatpush1.xpose.msra.mxu0 0.0
  %1235 = vmatprep.subr.mxu0 0.0
  %1236 = vmatpush1.xpose.msra.mxu0 0.0
  %1237 = vmatprep.subr.mxu0 0.0
  %1238 = vmatpush1.xpose.msra.mxu0 0.0
  %1239 = vmatprep.subr.mxu0 0.0
  %1240 = vmatpush1.xpose.msra.mxu0 0.0
  %1241 = vmatprep.subr.mxu0 0.0
  %1242 = vmatpush1.xpose.msra.mxu0 0.0
  %1243 = vmatprep.subr.mxu0 0.0
  %1244 = vmatpush1.xpose.msra.mxu0 0.0
  %1245 = vmatprep.subr.mxu0 0.0
  %1246 = vmatpush1.xpose.msra.mxu0 0.0
  %1247 = vmatprep.subr.mxu0 0.0
  %1248 = vmatpush1.xpose.msra.mxu0 0.0
  %1249 = vmatprep.subr.mxu0 0.0
  %1250 = vmatpush1.xpose.msra.mxu0 0.0
  %1251 = vmatprep.subr.mxu0 0.0
  %1252 = vmatpush1.xpose.msra.mxu0 0.0
  %1253 = vmatprep.subr.mxu0 0.0
  %1254 = vmatpush1.xpose.msra.mxu0 0.0
  %1255 = vmatprep.mubr.f32.mxu0 0.0
  %1256 = vmatmul.mubr.f32.gmra.mrb[0].mxu0 %v1180
  %v1257 = vpop.f32.mrb[0].mxu0
  %v1258 = vadd.f32 %v1002, %v1257
  %v1259 = vpop.f32.mrb[0].mxu0
  %1260 = vmatprep.mubr.f32.mxu0 0.0
  %1261 = vmatmul.mubr.f32.gmra.mrb[0].mxu0 %v1183
  %v1262 = vpop.f32.mrb[0].mxu0
  %v1263 = vadd.f32 %v1003, %v1262
  %v1264 = vpop.f32.mrb[0].mxu0
  %1265 = vdwg.mxu0
  %v1267 = vsel %vm1004, %v341, 0
  %v1270 = vsel %vm1004, %v409, 0
  %v1273 = vsel %vm1004, %v637, 0
  %v1276 = vsel %vm1004, %v705, 0
  %1278 = vmatprep.subr.mxu0 0.0
  %1279 = vmatpush1.xpose.msra.mxu0 %v1273
  %1280 = vmatprep.subr.mxu0 0.0
  %1281 = vmatpush1.xpose.msra.mxu0 %v1276
  %1282 = vmatprep.subr.mxu0 0.0
  %1283 = vmatpush1.xpose.msra.mxu0 0.0
  %1284 = vmatprep.subr.mxu0 0.0
  %1285 = vmatpush1.xpose.msra.mxu0 0.0
  %1286 = vmatprep.subr.mxu0 0.0
  %1287 = vmatpush1.xpose.msra.mxu0 0.0
  %1288 = vmatprep.subr.mxu0 0.0
  %1289 = vmatpush1.xpose.msra.mxu0 0.0
  %1290 = vmatprep.subr.mxu0 0.0
  %1291 = vmatpush1.xpose.msra.mxu0 0.0
  %1292 = vmatprep.subr.mxu0 0.0
  %1293 = vmatpush1.xpose.msra.mxu0 0.0
  %1294 = vmatprep.subr.mxu0 0.0
  %1295 = vmatpush1.xpose.msra.mxu0 0.0
  %1296 = vmatprep.subr.mxu0 0.0
  %1297 = vmatpush1.xpose.msra.mxu0 0.0
  %1298 = vmatprep.subr.mxu0 0.0
  %1299 = vmatpush1.xpose.msra.mxu0 0.0
  %1300 = vmatprep.subr.mxu0 0.0
  %1301 = vmatpush1.xpose.msra.mxu0 0.0
  %1302 = vmatprep.subr.mxu0 0.0
  %1303 = vmatpush1.xpose.msra.mxu0 0.0
  %1304 = vmatprep.subr.mxu0 0.0
  %1305 = vmatpush1.xpose.msra.mxu0 0.0
  %1306 = vmatprep.subr.mxu0 0.0
  %1307 = vmatpush1.xpose.msra.mxu0 0.0
  %1308 = vmatprep.subr.mxu0 0.0
  %1309 = vmatpush1.xpose.msra.mxu0 0.0
  %1310 = vmatprep.subr.mxu0 0.0
  %1311 = vmatpush1.xpose.msra.mxu0 0.0
  %1312 = vmatprep.subr.mxu0 0.0
  %1313 = vmatpush1.xpose.msra.mxu0 0.0
  %1314 = vmatprep.subr.mxu0 0.0
  %1315 = vmatpush1.xpose.msra.mxu0 0.0
  %1316 = vmatprep.subr.mxu0 0.0
  %1317 = vmatpush1.xpose.msra.mxu0 0.0
  %1318 = vmatprep.subr.mxu0 0.0
  %1319 = vmatpush1.xpose.msra.mxu0 0.0
  %1320 = vmatprep.subr.mxu0 0.0
  %1321 = vmatpush1.xpose.msra.mxu0 0.0
  %1322 = vmatprep.subr.mxu0 0.0
  %1323 = vmatpush1.xpose.msra.mxu0 0.0
  %1324 = vmatprep.subr.mxu0 0.0
  %1325 = vmatpush1.xpose.msra.mxu0 0.0
  %1326 = vmatprep.subr.mxu0 0.0
  %1327 = vmatpush1.xpose.msra.mxu0 0.0
  %1328 = vmatprep.subr.mxu0 0.0
  %1329 = vmatpush1.xpose.msra.mxu0 0.0
  %1330 = vmatprep.subr.mxu0 0.0
  %1331 = vmatpush1.xpose.msra.mxu0 0.0
  %1332 = vmatprep.subr.mxu0 0.0
  %1333 = vmatpush1.xpose.msra.mxu0 0.0
  %1334 = vmatprep.subr.mxu0 0.0
  %1335 = vmatpush1.xpose.msra.mxu0 0.0
  %1336 = vmatprep.subr.mxu0 0.0
  %1337 = vmatpush1.xpose.msra.mxu0 0.0
  %1338 = vmatprep.subr.mxu0 0.0
  %1339 = vmatpush1.xpose.msra.mxu0 0.0
  %1340 = vmatprep.subr.mxu0 0.0
  %1341 = vmatpush1.xpose.msra.mxu0 0.0
  %1342 = vmatprep.mubr.f32.mxu0 0.0
  %1343 = vmatmul.mubr.f32.gmra.mrb[0].mxu0 %v1267
  %v1344 = vpop.f32.mrb[0].mxu0
  %v1345 = vadd.f32 %v1002, %v1344
  %v1346 = vpop.f32.mrb[0].mxu0
  %1347 = vmatprep.mubr.f32.mxu0 0.0
  %1348 = vmatmul.mubr.f32.gmra.mrb[0].mxu0 %v1270
  %v1349 = vpop.f32.mrb[0].mxu0
  %v1350 = vadd.f32 %v1003, %v1349
  %v1351 = vpop.f32.mrb[0].mxu0
  %1352 = vdwg.mxu0
  %vm1353 = vcmask 130048
  %v1354 = vsel %vm1353, %v1084, -inf
  %1355 = vmax.xlane.f32.xlu0 %v1354
  %v1356 = vpop.xlane.xlu0 %1355
  %v1357 = vsel %vm1353, %v1089, -inf
  %1358 = vmax.xlane.f32.xlu0 %v1357
  %v1359 = vpop.xlane.xlu0 %1358
  %v1360 = vsel %vm1353, %v1171, -inf
  %1361 = vmax.xlane.f32.xlu0 %v1360
  %v1362 = vpop.xlane.xlu0 %1361
  %v1363 = vsel %vm1353, %v1176, -inf
  %1364 = vmax.xlane.f32.xlu0 %v1363
  %v1365 = vpop.xlane.xlu0 %1364
  %v1366 = vsel %vm1353, %v1258, -inf
  %1367 = vmax.xlane.f32.xlu0 %v1366
  %v1368 = vpop.xlane.xlu0 %1367
  %v1369 = vsel %vm1353, %v1263, -inf
  %1370 = vmax.xlane.f32.xlu0 %v1369
  %v1371 = vpop.xlane.xlu0 %1370
  %v1372 = vsel %vm1353, %v1345, -inf
  %1373 = vmax.xlane.f32.xlu0 %v1372
  %v1374 = vpop.xlane.xlu0 %1373
  %v1375 = vsel %vm1353, %v1350, -inf
  %1376 = vmax.xlane.f32.xlu0 %v1375
  %v1377 = vpop.xlane.xlu0 %1376
  %v1378 = vsub.f32 %v1084, %v1356
  %v1379 = vsub.f32 %v1089, %v1359
  %v1380 = vsub.f32 %v1171, %v1362
  %v1381 = vsub.f32 %v1176, %v1365
  %v1382 = vsub.f32 %v1258, %v1368
  %v1383 = vsub.f32 %v1263, %v1371
  %v1384 = vsub.f32 %v1345, %v1374
  %v1385 = vsub.f32 %v1350, %v1377
  %v1386 = vmul.f32 %v1378, 1.442695
  %v1387 = vpow.pop %v1386
  %v1388 = vmul.f32 %v1379, 1.442695
  %v1389 = vpow.pop %v1388
  %v1390 = vmul.f32 %v1380, 1.442695
  %v1391 = vpow.pop %v1390
  %v1392 = vmul.f32 %v1381, 1.442695
  %v1393 = vpow.pop %v1392
  %v1394 = vmul.f32 %v1382, 1.442695
  %v1395 = vpow.pop %v1394
  %v1396 = vmul.f32 %v1383, 1.442695
  %v1397 = vpow.pop %v1396
  %v1398 = vmul.f32 %v1384, 1.442695
  %v1399 = vpow.pop %v1398
  %v1400 = vmul.f32 %v1385, 1.442695
  %v1401 = vpow.pop %v1400
  %v1402 = vsel %vm1353, %v1387, 0.0
  %1403 = vadd.xlane.f32.xlu0 %v1402
  %v1404 = vpop.xlane.xlu0 %1403
  %v1405 = vsel %vm1353, %v1389, 0.0
  %1406 = vadd.xlane.f32.xlu0 %v1405
  %v1407 = vpop.xlane.xlu0 %1406
  %v1408 = vsel %vm1353, %v1391, 0.0
  %1409 = vadd.xlane.f32.xlu0 %v1408
  %v1410 = vpop.xlane.xlu0 %1409
  %v1411 = vsel %vm1353, %v1393, 0.0
  %1412 = vadd.xlane.f32.xlu0 %v1411
  %v1413 = vpop.xlane.xlu0 %1412
  %v1414 = vsel %vm1353, %v1395, 0.0
  %1415 = vadd.xlane.f32.xlu0 %v1414
  %v1416 = vpop.xlane.xlu0 %1415
  %v1417 = vsel %vm1353, %v1397, 0.0
  %1418 = vadd.xlane.f32.xlu0 %v1417
  %v1419 = vpop.xlane.xlu0 %1418
  %v1420 = vsel %vm1353, %v1399, 0.0
  %1421 = vadd.xlane.f32.xlu0 %v1420
  %v1422 = vpop.xlane.xlu0 %1421
  %v1423 = vsel %vm1353, %v1401, 0.0
  %1424 = vadd.xlane.f32.xlu0 %v1423
  %v1425 = vpop.xlane.xlu0 %1424
  %v1426 = vrcp.pop %v1404
  %v1427 = vrcp.pop %v1407
  %v1428 = vrcp.pop %v1410
  %v1429 = vrcp.pop %v1413
  %v1430 = vrcp.pop %v1416
  %v1431 = vrcp.pop %v1419
  %v1432 = vrcp.pop %v1422
  %v1433 = vrcp.pop %v1425
  %v1434 = vmul.f32 %v1404, %v1426
  %v1435 = vmul.f32 %v1407, %v1427
  %v1436 = vmul.f32 %v1410, %v1428
  %v1437 = vmul.f32 %v1413, %v1429
  %v1438 = vmul.f32 %v1416, %v1430
  %v1439 = vmul.f32 %v1419, %v1431
  %v1440 = vmul.f32 %v1422, %v1432
  %v1441 = vmul.f32 %v1425, %v1433
  %v1442 = vsub.f32 2.0, %v1434
  %v1443 = vsub.f32 2.0, %v1435
  %v1444 = vsub.f32 2.0, %v1436
  %v1445 = vsub.f32 2.0, %v1437
  %v1446 = vsub.f32 2.0, %v1438
  %v1447 = vsub.f32 2.0, %v1439
  %v1448 = vsub.f32 2.0, %v1440
  %v1449 = vsub.f32 2.0, %v1441
  %v1450 = vmul.f32 %v1426, %v1442
  %v1451 = vmul.f32 %v1427, %v1443
  %v1452 = vmul.f32 %v1428, %v1444
  %v1453 = vmul.f32 %v1429, %v1445
  %v1454 = vmul.f32 %v1430, %v1446
  %v1455 = vmul.f32 %v1431, %v1447
  %v1456 = vmul.f32 %v1432, %v1448
  %v1457 = vmul.f32 %v1433, %v1449
  %v1458 = vmul.f32 %v1387, %v1450
  %v1459 = vmul.f32 %v1389, %v1451
  %v1460 = vmul.f32 %v1391, %v1452
  %v1461 = vmul.f32 %v1393, %v1453
  %v1462 = vmul.f32 %v1395, %v1454
  %v1463 = vmul.f32 %v1397, %v1455
  %v1464 = vmul.f32 %v1399, %v1456
  %v1465 = vmul.f32 %v1401, %v1457
  %v1467 = vsel %vm1353, %v1458, 0
  %v1470 = vsel %vm1353, %v1459, 0
  %1472 = vmatprep.subr.mxu0 0.0
  %1473 = vmatpush1.msra.mxu0 %v930
  %1474 = vmatprep.subr.mxu0 0.0
  %1475 = vmatpush1.msra.mxu0 %v998
  %1476 = vmatprep.subr.mxu0 0.0
  %1477 = vmatpush1.msra.mxu0 0.0
  %1478 = vmatprep.subr.mxu0 0.0
  %1479 = vmatpush1.msra.mxu0 0.0
  %1480 = vmatprep.subr.mxu0 0.0
  %1481 = vmatpush1.msra.mxu0 0.0
  %1482 = vmatprep.subr.mxu0 0.0
  %1483 = vmatpush1.msra.mxu0 0.0
  %1484 = vmatprep.subr.mxu0 0.0
  %1485 = vmatpush1.msra.mxu0 0.0
  %1486 = vmatprep.subr.mxu0 0.0
  %1487 = vmatpush1.msra.mxu0 0.0
  %1488 = vmatprep.subr.mxu0 0.0
  %1489 = vmatpush1.msra.mxu0 0.0
  %1490 = vmatprep.subr.mxu0 0.0
  %1491 = vmatpush1.msra.mxu0 0.0
  %1492 = vmatprep.subr.mxu0 0.0
  %1493 = vmatpush1.msra.mxu0 0.0
  %1494 = vmatprep.subr.mxu0 0.0
  %1495 = vmatpush1.msra.mxu0 0.0
  %1496 = vmatprep.subr.mxu0 0.0
  %1497 = vmatpush1.msra.mxu0 0.0
  %1498 = vmatprep.subr.mxu0 0.0
  %1499 = vmatpush1.msra.mxu0 0.0
  %1500 = vmatprep.subr.mxu0 0.0
  %1501 = vmatpush1.msra.mxu0 0.0
  %1502 = vmatprep.subr.mxu0 0.0
  %1503 = vmatpush1.msra.mxu0 0.0
  %1504 = vmatprep.subr.mxu0 0.0
  %1505 = vmatpush1.msra.mxu0 0.0
  %1506 = vmatprep.subr.mxu0 0.0
  %1507 = vmatpush1.msra.mxu0 0.0
  %1508 = vmatprep.subr.mxu0 0.0
  %1509 = vmatpush1.msra.mxu0 0.0
  %1510 = vmatprep.subr.mxu0 0.0
  %1511 = vmatpush1.msra.mxu0 0.0
  %1512 = vmatprep.subr.mxu0 0.0
  %1513 = vmatpush1.msra.mxu0 0.0
  %1514 = vmatprep.subr.mxu0 0.0
  %1515 = vmatpush1.msra.mxu0 0.0
  %1516 = vmatprep.subr.mxu0 0.0
  %1517 = vmatpush1.msra.mxu0 0.0
  %1518 = vmatprep.subr.mxu0 0.0
  %1519 = vmatpush1.msra.mxu0 0.0
  %1520 = vmatprep.subr.mxu0 0.0
  %1521 = vmatpush1.msra.mxu0 0.0
  %1522 = vmatprep.subr.mxu0 0.0
  %1523 = vmatpush1.msra.mxu0 0.0
  %1524 = vmatprep.subr.mxu0 0.0
  %1525 = vmatpush1.msra.mxu0 0.0
  %1526 = vmatprep.subr.mxu0 0.0
  %1527 = vmatpush1.msra.mxu0 0.0
  %1528 = vmatprep.subr.mxu0 0.0
  %1529 = vmatpush1.msra.mxu0 0.0
  %1530 = vmatprep.subr.mxu0 0.0
  %1531 = vmatpush1.msra.mxu0 0.0
  %1532 = vmatprep.subr.mxu0 0.0
  %1533 = vmatpush1.msra.mxu0 0.0
  %1534 = vmatprep.subr.mxu0 0.0
  %1535 = vmatpush1.msra.mxu0 0.0
  %1536 = vmatprep.mubr.f32.mxu0 0.0
  %1537 = vmatmul.mubr.f32.gmra.mrb[0].mxu0 %v1467
  %v1538 = vpop.f32.mrb[0].mxu0
  %v1539 = vadd.f32 0.0, %v1538
  %v1540 = vpop.f32.mrb[0].mxu0
  %1541 = vmatprep.mubr.f32.mxu0 0.0
  %1542 = vmatmul.mubr.f32.gmra.mrb[0].mxu0 %v1470
  %v1543 = vpop.f32.mrb[0].mxu0
  %v1544 = vadd.f32 0.0, %v1543
  %v1545 = vpop.f32.mrb[0].mxu0
  %1546 = vdwg.mxu0
  %v1548 = vsel %vm1353, %v1460, 0
  %v1551 = vsel %vm1353, %v1461, 0
  %1553 = vmatprep.subr.mxu0 0.0
  %1554 = vmatpush1.msra.mxu0 %v931
  %1555 = vmatprep.subr.mxu0 0.0
  %1556 = vmatpush1.msra.mxu0 %v999
  %1557 = vmatprep.subr.mxu0 0.0
  %1558 = vmatpush1.msra.mxu0 0.0
  %1559 = vmatprep.subr.mxu0 0.0
  %1560 = vmatpush1.msra.mxu0 0.0
  %1561 = vmatprep.subr.mxu0 0.0
  %1562 = vmatpush1.msra.mxu0 0.0
  %1563 = vmatprep.subr.mxu0 0.0
  %1564 = vmatpush1.msra.mxu0 0.0
  %1565 = vmatprep.subr.mxu0 0.0
  %1566 = vmatpush1.msra.mxu0 0.0
  %1567 = vmatprep.subr.mxu0 0.0
  %1568 = vmatpush1.msra.mxu0 0.0
  %1569 = vmatprep.subr.mxu0 0.0
  %1570 = vmatpush1.msra.mxu0 0.0
  %1571 = vmatprep.subr.mxu0 0.0
  %1572 = vmatpush1.msra.mxu0 0.0
  %1573 = vmatprep.subr.mxu0 0.0
  %1574 = vmatpush1.msra.mxu0 0.0
  %1575 = vmatprep.subr.mxu0 0.0
  %1576 = vmatpush1.msra.mxu0 0.0
  %1577 = vmatprep.subr.mxu0 0.0
  %1578 = vmatpush1.msra.mxu0 0.0
  %1579 = vmatprep.subr.mxu0 0.0
  %1580 = vmatpush1.msra.mxu0 0.0
  %1581 = vmatprep.subr.mxu0 0.0
  %1582 = vmatpush1.msra.mxu0 0.0
  %1583 = vmatprep.subr.mxu0 0.0
  %1584 = vmatpush1.msra.mxu0 0.0
  %1585 = vmatprep.subr.mxu0 0.0
  %1586 = vmatpush1.msra.mxu0 0.0
  %1587 = vmatprep.subr.mxu0 0.0
  %1588 = vmatpush1.msra.mxu0 0.0
  %1589 = vmatprep.subr.mxu0 0.0
  %1590 = vmatpush1.msra.mxu0 0.0
  %1591 = vmatprep.subr.mxu0 0.0
  %1592 = vmatpush1.msra.mxu0 0.0
  %1593 = vmatprep.subr.mxu0 0.0
  %1594 = vmatpush1.msra.mxu0 0.0
  %1595 = vmatprep.subr.mxu0 0.0
  %1596 = vmatpush1.msra.mxu0 0.0
  %1597 = vmatprep.subr.mxu0 0.0
  %1598 = vmatpush1.msra.mxu0 0.0
  %1599 = vmatprep.subr.mxu0 0.0
  %1600 = vmatpush1.msra.mxu0 0.0
  %1601 = vmatprep.subr.mxu0 0.0
  %1602 = vmatpush1.msra.mxu0 0.0
  %1603 = vmatprep.subr.mxu0 0.0
  %1604 = vmatpush1.msra.mxu0 0.0
  %1605 = vmatprep.subr.mxu0 0.0
  %1606 = vmatpush1.msra.mxu0 0.0
  %1607 = vmatprep.subr.mxu0 0.0
  %1608 = vmatpush1.msra.mxu0 0.0
  %1609 = vmatprep.subr.mxu0 0.0
  %1610 = vmatpush1.msra.mxu0 0.0
  %1611 = vmatprep.subr.mxu0 0.0
  %1612 = vmatpush1.msra.mxu0 0.0
  %1613 = vmatprep.subr.mxu0 0.0
  %1614 = vmatpush1.msra.mxu0 0.0
  %1615 = vmatprep.subr.mxu0 0.0
  %1616 = vmatpush1.msra.mxu0 0.0
  %1617 = vmatprep.mubr.f32.mxu0 0.0
  %1618 = vmatmul.mubr.f32.gmra.mrb[0].mxu0 %v1548
  %v1619 = vpop.f32.mrb[0].mxu0
  %v1620 = vadd.f32 0.0, %v1619
  %v1621 = vpop.f32.mrb[0].mxu0
  %1622 = vmatprep.mubr.f32.mxu0 0.0
  %1623 = vmatmul.mubr.f32.gmra.mrb[0].mxu0 %v1551
  %v1624 = vpop.f32.mrb[0].mxu0
  %v1625 = vadd.f32 0.0, %v1624
  %v1626 = vpop.f32.mrb[0].mxu0
  %1627 = vdwg.mxu0
  %v1629 = vsel %vm1353, %v1462, 0
  %v1632 = vsel %vm1353, %v1463, 0
  %1634 = vmatprep.subr.mxu0 0.0
  %1635 = vmatpush1.msra.mxu0 %v932
  %1636 = vmatprep.subr.mxu0 0.0
  %1637 = vmatpush1.msra.mxu0 %v1000
  %1638 = vmatprep.subr.mxu0 0.0
  %1639 = vmatpush1.msra.mxu0 0.0
  %1640 = vmatprep.subr.mxu0 0.0
  %1641 = vmatpush1.msra.mxu0 0.0
  %1642 = vmatprep.subr.mxu0 0.0
  %1643 = vmatpush1.msra.mxu0 0.0
  %1644 = vmatprep.subr.mxu0 0.0
  %1645 = vmatpush1.msra.mxu0 0.0
  %1646 = vmatprep.subr.mxu0 0.0
  %1647 = vmatpush1.msra.mxu0 0.0
  %1648 = vmatprep.subr.mxu0 0.0
  %1649 = vmatpush1.msra.mxu0 0.0
  %1650 = vmatprep.subr.mxu0 0.0
  %1651 = vmatpush1.msra.mxu0 0.0
  %1652 = vmatprep.subr.mxu0 0.0
  %1653 = vmatpush1.msra.mxu0 0.0
  %1654 = vmatprep.subr.mxu0 0.0
  %1655 = vmatpush1.msra.mxu0 0.0
  %1656 = vmatprep.subr.mxu0 0.0
  %1657 = vmatpush1.msra.mxu0 0.0
  %1658 = vmatprep.subr.mxu0 0.0
  %1659 = vmatpush1.msra.mxu0 0.0
  %1660 = vmatprep.subr.mxu0 0.0
  %1661 = vmatpush1.msra.mxu0 0.0
  %1662 = vmatprep.subr.mxu0 0.0
  %1663 = vmatpush1.msra.mxu0 0.0
  %1664 = vmatprep.subr.mxu0 0.0
  %1665 = vmatpush1.msra.mxu0 0.0
  %1666 = vmatprep.subr.mxu0 0.0
  %1667 = vmatpush1.msra.mxu0 0.0
  %1668 = vmatprep.subr.mxu0 0.0
  %1669 = vmatpush1.msra.mxu0 0.0
  %1670 = vmatprep.subr.mxu0 0.0
  %1671 = vmatpush1.msra.mxu0 0.0
  %1672 = vmatprep.subr.mxu0 0.0
  %1673 = vmatpush1.msra.mxu0 0.0
  %1674 = vmatprep.subr.mxu0 0.0
  %1675 = vmatpush1.msra.mxu0 0.0
  %1676 = vmatprep.subr.mxu0 0.0
  %1677 = vmatpush1.msra.mxu0 0.0
  %1678 = vmatprep.subr.mxu0 0.0
  %1679 = vmatpush1.msra.mxu0 0.0
  %1680 = vmatprep.subr.mxu0 0.0
  %1681 = vmatpush1.msra.mxu0 0.0
  %1682 = vmatprep.subr.mxu0 0.0
  %1683 = vmatpush1.msra.mxu0 0.0
  %1684 = vmatprep.subr.mxu0 0.0
  %1685 = vmatpush1.msra.mxu0 0.0
  %1686 = vmatprep.subr.mxu0 0.0
  %1687 = vmatpush1.msra.mxu0 0.0
  %1688 = vmatprep.subr.mxu0 0.0
  %1689 = vmatpush1.msra.mxu0 0.0
  %1690 = vmatprep.subr.mxu0 0.0
  %1691 = vmatpush1.msra.mxu0 0.0
  %1692 = vmatprep.subr.mxu0 0.0
  %1693 = vmatpush1.msra.mxu0 0.0
  %1694 = vmatprep.subr.mxu0 0.0
  %1695 = vmatpush1.msra.mxu0 0.0
  %1696 = vmatprep.subr.mxu0 0.0
  %1697 = vmatpush1.msra.mxu0 0.0
  %1698 = vmatprep.mubr.f32.mxu0 0.0
  %1699 = vmatmul.mubr.f32.gmra.mrb[0].mxu0 %v1629
  %v1700 = vpop.f32.mrb[0].mxu0
  %v1701 = vadd.f32 0.0, %v1700
  %v1702 = vpop.f32.mrb[0].mxu0
  %1703 = vmatprep.mubr.f32.mxu0 0.0
  %1704 = vmatmul.mubr.f32.gmra.mrb[0].mxu0 %v1632
  %v1705 = vpop.f32.mrb[0].mxu0
  %v1706 = vadd.f32 0.0, %v1705
  %v1707 = vpop.f32.mrb[0].mxu0
  %1708 = vdwg.mxu0
  %v1710 = vsel %vm1353, %v1464, 0
  %v1713 = vsel %vm1353, %v1465, 0
  %1715 = vmatprep.subr.mxu0 0.0
  %1716 = vmatpush1.msra.mxu0 %v933
  %1717 = vmatprep.subr.mxu0 0.0
  %1718 = vmatpush1.msra.mxu0 %v1001
  %1719 = vmatprep.subr.mxu0 0.0
  %1720 = vmatpush1.msra.mxu0 0.0
  %1721 = vmatprep.subr.mxu0 0.0
  %1722 = vmatpush1.msra.mxu0 0.0
  %1723 = vmatprep.subr.mxu0 0.0
  %1724 = vmatpush1.msra.mxu0 0.0
  %1725 = vmatprep.subr.mxu0 0.0
  %1726 = vmatpush1.msra.mxu0 0.0
  %1727 = vmatprep.subr.mxu0 0.0
  %1728 = vmatpush1.msra.mxu0 0.0
  %1729 = vmatprep.subr.mxu0 0.0
  %1730 = vmatpush1.msra.mxu0 0.0
  %1731 = vmatprep.subr.mxu0 0.0
  %1732 = vmatpush1.msra.mxu0 0.0
  %1733 = vmatprep.subr.mxu0 0.0
  %1734 = vmatpush1.msra.mxu0 0.0
  %1735 = vmatprep.subr.mxu0 0.0
  %1736 = vmatpush1.msra.mxu0 0.0
  %1737 = vmatprep.subr.mxu0 0.0
  %1738 = vmatpush1.msra.mxu0 0.0
  %1739 = vmatprep.subr.mxu0 0.0
  %1740 = vmatpush1.msra.mxu0 0.0
  %1741 = vmatprep.subr.mxu0 0.0
  %1742 = vmatpush1.msra.mxu0 0.0
  %1743 = vmatprep.subr.mxu0 0.0
  %1744 = vmatpush1.msra.mxu0 0.0
  %1745 = vmatprep.subr.mxu0 0.0
  %1746 = vmatpush1.msra.mxu0 0.0
  %1747 = vmatprep.subr.mxu0 0.0
  %1748 = vmatpush1.msra.mxu0 0.0
  %1749 = vmatprep.subr.mxu0 0.0
  %1750 = vmatpush1.msra.mxu0 0.0
  %1751 = vmatprep.subr.mxu0 0.0
  %1752 = vmatpush1.msra.mxu0 0.0
  %1753 = vmatprep.subr.mxu0 0.0
  %1754 = vmatpush1.msra.mxu0 0.0
  %1755 = vmatprep.subr.mxu0 0.0
  %1756 = vmatpush1.msra.mxu0 0.0
  %1757 = vmatprep.subr.mxu0 0.0
  %1758 = vmatpush1.msra.mxu0 0.0
  %1759 = vmatprep.subr.mxu0 0.0
  %1760 = vmatpush1.msra.mxu0 0.0
  %1761 = vmatprep.subr.mxu0 0.0
  %1762 = vmatpush1.msra.mxu0 0.0
  %1763 = vmatprep.subr.mxu0 0.0
  %1764 = vmatpush1.msra.mxu0 0.0
  %1765 = vmatprep.subr.mxu0 0.0
  %1766 = vmatpush1.msra.mxu0 0.0
  %1767 = vmatprep.subr.mxu0 0.0
  %1768 = vmatpush1.msra.mxu0 0.0
  %1769 = vmatprep.subr.mxu0 0.0
  %1770 = vmatpush1.msra.mxu0 0.0
  %1771 = vmatprep.subr.mxu0 0.0
  %1772 = vmatpush1.msra.mxu0 0.0
  %1773 = vmatprep.subr.mxu0 0.0
  %1774 = vmatpush1.msra.mxu0 0.0
  %1775 = vmatprep.subr.mxu0 0.0
  %1776 = vmatpush1.msra.mxu0 0.0
  %1777 = vmatprep.subr.mxu0 0.0
  %1778 = vmatpush1.msra.mxu0 0.0
  %1779 = vmatprep.mubr.f32.mxu0 0.0
  %1780 = vmatmul.mubr.f32.gmra.mrb[0].mxu0 %v1710
  %v1781 = vpop.f32.mrb[0].mxu0
  %v1782 = vadd.f32 0.0, %v1781
  %v1783 = vpop.f32.mrb[0].mxu0
  %1784 = vmatprep.mubr.f32.mxu0 0.0
  %1785 = vmatmul.mubr.f32.gmra.mrb[0].mxu0 %v1713
  %v1786 = vpop.f32.mrb[0].mxu0
  %v1787 = vadd.f32 0.0, %v1786
  %v1788 = vpop.f32.mrb[0].mxu0
  %1789 = vdwg.mxu0
  %v1790 = vcombine.low %v1539, %v1701
  %v1791 = vcombine.high %v1539, %v1701
  %v1793 = vunpack.c.l.s4 1983009808
  %v1794 = vunpack.c.0.s8 %v1793
  %v1795 = vlaneseq
  %v1796 = vshrl.u32 %v1795, 7
  %v1797 = vsub.s32 %v1794, %v1796
  %v1798 = vrot.slane %v1790, %v1797
  %v1800 = vunpack.c.l.s4 1983009808
  %v1801 = vunpack.c.0.s8 %v1800
  %v1802 = vlaneseq
  %v1803 = vshrl.u32 %v1802, 7
  %v1804 = vsub.s32 %v1801, %v1803
  %v1805 = vrot.slane %v1791, %v1804
  %v1806 = vcombine.low %v1620, %v1782
  %v1807 = vcombine.high %v1620, %v1782
  %v1809 = vunpack.c.l.s4 1983009808
  %v1810 = vunpack.c.0.s8 %v1809
  %v1811 = vlaneseq
  %v1812 = vshrl.u32 %v1811, 7
  %v1813 = vsub.s32 %v1810, %v1812
  %v1814 = vrot.slane %v1806, %v1813
  %v1816 = vunpack.c.l.s4 1983009808
  %v1817 = vunpack.c.0.s8 %v1816
  %v1818 = vlaneseq
  %v1819 = vshrl.u32 %v1818, 7
  %v1820 = vsub.s32 %v1817, %v1819
  %v1821 = vrot.slane %v1807, %v1820
  %v1822 = vcombine.low %v1798, %v1814
  %v1823 = vcombine.high %v1798, %v1814
  %v1825 = vunpack.c.l.s4 1934713408
  %v1826 = vunpack.c.0.s8 %v1825
  %v1827 = vlaneseq
  %v1828 = vshrl.u32 %v1827, 7
  %v1829 = vsub.s32 %v1826, %v1828
  %v1830 = vrot.slane %v1822, %v1829
  %v1832 = vunpack.c.l.s4 1934713408
  %v1833 = vunpack.c.0.s8 %v1832
  %v1834 = vlaneseq
  %v1835 = vshrl.u32 %v1834, 7
  %v1836 = vsub.s32 %v1833, %v1835
  %v1837 = vrot.slane %v1823, %v1836
  %v1838 = vcombine.low %v1805, %v1821
  %v1839 = vcombine.high %v1805, %v1821
  %v1841 = vunpack.c.l.s4 1934713408
  %v1842 = vunpack.c.0.s8 %v1841
  %v1843 = vlaneseq
  %v1844 = vshrl.u32 %v1843, 7
  %v1845 = vsub.s32 %v1842, %v1844
  %v1846 = vrot.slane %v1838, %v1845
  %v1848 = vunpack.c.l.s4 1934713408
  %v1849 = vunpack.c.0.s8 %v1848
  %v1850 = vlaneseq
  %v1851 = vshrl.u32 %v1850, 7
  %v1852 = vsub.s32 %v1849, %v1851
  %v1853 = vrot.slane %v1839, %v1852
  %v1854 = vcombine.high %v1830, 0.0
  %v1855 = vcombine.high %v1837, 0.0
  %v1856 = vcombine.high %v1846, 0.0
  %v1857 = vcombine.high %v1853, 0.0
  %v1858 = vcombine.low %v1544, %v1706
  %v1859 = vcombine.high %v1544, %v1706
  %v1861 = vunpack.c.l.s4 1983009808
  %v1862 = vunpack.c.0.s8 %v1861
  %v1863 = vlaneseq
  %v1864 = vshrl.u32 %v1863, 7
  %v1865 = vsub.s32 %v1862, %v1864
  %v1866 = vrot.slane %v1858, %v1865
  %v1868 = vunpack.c.l.s4 1983009808
  %v1869 = vunpack.c.0.s8 %v1868
  %v1870 = vlaneseq
  %v1871 = vshrl.u32 %v1870, 7
  %v1872 = vsub.s32 %v1869, %v1871
  %v1873 = vrot.slane %v1859, %v1872
  %v1874 = vcombine.low %v1625, %v1787
  %v1875 = vcombine.high %v1625, %v1787
  %v1877 = vunpack.c.l.s4 1983009808
  %v1878 = vunpack.c.0.s8 %v1877
  %v1879 = vlaneseq
  %v1880 = vshrl.u32 %v1879, 7
  %v1881 = vsub.s32 %v1878, %v1880
  %v1882 = vrot.slane %v1874, %v1881
  %v1884 = vunpack.c.l.s4 1983009808
  %v1885 = vunpack.c.0.s8 %v1884
  %v1886 = vlaneseq
  %v1887 = vshrl.u32 %v1886, 7
  %v1888 = vsub.s32 %v1885, %v1887
  %v1889 = vrot.slane %v1875, %v1888
  %v1890 = vcombine.low %v1866, %v1882
  %v1891 = vcombine.high %v1866, %v1882
  %v1893 = vunpack.c.l.s4 1934713408
  %v1894 = vunpack.c.0.s8 %v1893
  %v1895 = vlaneseq
  %v1896 = vshrl.u32 %v1895, 7
  %v1897 = vsub.s32 %v1894, %v1896
  %v1898 = vrot.slane %v1890, %v1897
  %v1900 = vunpack.c.l.s4 1934713408
  %v1901 = vunpack.c.0.s8 %v1900
  %v1902 = vlaneseq
  %v1903 = vshrl.u32 %v1902, 7
  %v1904 = vsub.s32 %v1901, %v1903
  %v1905 = vrot.slane %v1891, %v1904
  %v1906 = vcombine.low %v1873, %v1889
  %v1907 = vcombine.high %v1873, %v1889
  %v1909 = vunpack.c.l.s4 1934713408
  %v1910 = vunpack.c.0.s8 %v1909
  %v1911 = vlaneseq
  %v1912 = vshrl.u32 %v1911, 7
  %v1913 = vsub.s32 %v1910, %v1912
  %v1914 = vrot.slane %v1906, %v1913
  %v1916 = vunpack.c.l.s4 1934713408
  %v1917 = vunpack.c.0.s8 %v1916
  %v1918 = vlaneseq
  %v1919 = vshrl.u32 %v1918, 7
  %v1920 = vsub.s32 %v1917, %v1919
  %v1921 = vrot.slane %v1907, %v1920
  %v1922 = vcombine.high %v1898, 0.0
  %v1923 = vcombine.high %v1905, 0.0
  %v1924 = vcombine.high %v1914, 0.0
  %v1925 = vcombine.high %v1921, 0.0
  %v1926 = vcombine.low %v1830, %v1837
  %v1928 = vunpack.c.l.s4 1983009808
  %v1929 = vunpack.c.0.s8 %v1928
  %v1930 = vlaneseq
  %v1931 = vshrl.u32 %v1930, 7
  %v1932 = vsub.s32 %v1929, %v1931
  %v1933 = vrot.slane %v1926, %v1932
  %v1934 = vcombine.low %v1854, %v1855
  %v1936 = vunpack.c.l.s4 1983009808
  %v1937 = vunpack.c.0.s8 %v1936
  %v1938 = vlaneseq
  %v1939 = vshrl.u32 %v1938, 7
  %v1940 = vsub.s32 %v1937, %v1939
  %v1941 = vrot.slane %v1934, %v1940
  %v1942 = vcombine.low %v1846, %v1853
  %v1944 = vunpack.c.l.s4 1983009808
  %v1945 = vunpack.c.0.s8 %v1944
  %v1946 = vlaneseq
  %v1947 = vshrl.u32 %v1946, 7
  %v1948 = vsub.s32 %v1945, %v1947
  %v1949 = vrot.slane %v1942, %v1948
  %v1950 = vcombine.low %v1856, %v1857
  %v1952 = vunpack.c.l.s4 1983009808
  %v1953 = vunpack.c.0.s8 %v1952
  %v1954 = vlaneseq
  %v1955 = vshrl.u32 %v1954, 7
  %v1956 = vsub.s32 %v1953, %v1955
  %v1957 = vrot.slane %v1950, %v1956
  %v1958 = vcombine.low %v1933, %v1941
  %v1959 = vcombine.high %v1933, %v1941
  %v1961 = vunpack.c.l.s4 1934713408
  %v1962 = vunpack.c.0.s8 %v1961
  %v1963 = vlaneseq
  %v1964 = vshrl.u32 %v1963, 7
  %v1965 = vsub.s32 %v1962, %v1964
  %v1966 = vrot.slane %v1958, %v1965
  %v1968 = vunpack.c.l.s4 1934713408
  %v1969 = vunpack.c.0.s8 %v1968
  %v1970 = vlaneseq
  %v1971 = vshrl.u32 %v1970, 7
  %v1972 = vsub.s32 %v1969, %v1971
  %v1973 = vrot.slane %v1959, %v1972
  %v1974 = vcombine.low %v1949, %v1957
  %v1975 = vcombine.high %v1949, %v1957
  %v1977 = vunpack.c.l.s4 1934713408
  %v1978 = vunpack.c.0.s8 %v1977
  %v1979 = vlaneseq
  %v1980 = vshrl.u32 %v1979, 7
  %v1981 = vsub.s32 %v1978, %v1980
  %v1982 = vrot.slane %v1974, %v1981
  %v1984 = vunpack.c.l.s4 1934713408
  %v1985 = vunpack.c.0.s8 %v1984
  %v1986 = vlaneseq
  %v1987 = vshrl.u32 %v1986, 7
  %v1988 = vsub.s32 %v1985, %v1987
  %v1989 = vrot.slane %v1975, %v1988
  %v1990 = vcombine.low %v1966, %v1982
  %v1991 = vcombine.high %v1966, %v1982
  %v1992 = vcombine.low %v1973, %v1989
  %v1993 = vcombine.high %v1973, %v1989
  %v1994 = vcombine.low %v1898, %v1905
  %v1996 = vunpack.c.l.s4 1983009808
  %v1997 = vunpack.c.0.s8 %v1996
  %v1998 = vlaneseq
  %v1999 = vshrl.u32 %v1998, 7
  %v2000 = vsub.s32 %v1997, %v1999
  %v2001 = vrot.slane %v1994, %v2000
  %v2002 = vcombine.low %v1922, %v1923
  %v2004 = vunpack.c.l.s4 1983009808
  %v2005 = vunpack.c.0.s8 %v2004
  %v2006 = vlaneseq
  %v2007 = vshrl.u32 %v2006, 7
  %v2008 = vsub.s32 %v2005, %v2007
  %v2009 = vrot.slane %v2002, %v2008
  %v2010 = vcombine.low %v1914, %v1921
  %v2012 = vunpack.c.l.s4 1983009808
  %v2013 = vunpack.c.0.s8 %v2012
  %v2014 = vlaneseq
  %v2015 = vshrl.u32 %v2014, 7
  %v2016 = vsub.s32 %v2013, %v2015
  %v2017 = vrot.slane %v2010, %v2016
  %v2018 = vcombine.low %v1924, %v1925
  %v2020 = vunpack.c.l.s4 1983009808
  %v2021 = vunpack.c.0.s8 %v2020
  %v2022 = vlaneseq
  %v2023 = vshrl.u32 %v2022, 7
  %v2024 = vsub.s32 %v2021, %v2023
  %v2025 = vrot.slane %v2018, %v2024
  %v2026 = vcombine.low %v2001, %v2009
  %v2027 = vcombine.high %v2001, %v2009
  %v2029 = vunpack.c.l.s4 1934713408
  %v2030 = vunpack.c.0.s8 %v2029
  %v2031 = vlaneseq
  %v2032 = vshrl.u32 %v2031, 7
  %v2033 = vsub.s32 %v2030, %v2032
  %v2034 = vrot.slane %v2026, %v2033
  %v2036 = vunpack.c.l.s4 1934713408
  %v2037 = vunpack.c.0.s8 %v2036
  %v2038 = vlaneseq
  %v2039 = vshrl.u32 %v2038, 7
  %v2040 = vsub.s32 %v2037, %v2039
  %v2041 = vrot.slane %v2027, %v2040
  %v2042 = vcombine.low %v2017, %v2025
  %v2043 = vcombine.high %v2017, %v2025
  %v2045 = vunpack.c.l.s4 1934713408
  %v2046 = vunpack.c.0.s8 %v2045
  %v2047 = vlaneseq
  %v2048 = vshrl.u32 %v2047, 7
  %v2049 = vsub.s32 %v2046, %v2048
  %v2050 = vrot.slane %v2042, %v2049
  %v2052 = vunpack.c.l.s4 1934713408
  %v2053 = vunpack.c.0.s8 %v2052
  %v2054 = vlaneseq
  %v2055 = vshrl.u32 %v2054, 7
  %v2056 = vsub.s32 %v2053, %v2055
  %v2057 = vrot.slane %v2043, %v2056
  %v2058 = vcombine.low %v2034, %v2050
  %v2059 = vcombine.high %v2034, %v2050
  %v2060 = vcombine.low %v2041, %v2057
  %v2061 = vcombine.high %v2041, %v2057
  %2064 = vrot.lane.b32.xlu0 %v1991, 8
  %v2065 = vpop.permute.xlu0 %2064
  %2066 = vrot.lane.b32.xlu0 %v2059, 8
  %v2067 = vpop.permute.xlu0 %2066
  %2072 = vrot.lane.b32.xlu0 %v1992, 16
  %v2073 = vpop.permute.xlu0 %2072
  %2074 = vrot.lane.b32.xlu0 %v2060, 16
  %v2075 = vpop.permute.xlu0 %2074
  %2080 = vrot.lane.b32.xlu0 %v1993, 24
  %v2081 = vpop.permute.xlu0 %2080
  %2082 = vrot.lane.b32.xlu0 %v2061, 24
  %v2083 = vpop.permute.xlu0 %2082
  %v2086 = vsel %vm1004, %v1990, %v2065
  %v2087 = vsel %vm1004, %v2058, %v2067
  %v2088 = vsel %vm1353, %v2086, %v2073
  %v2089 = vsel %vm1353, %v2087, %v2075
  %vm2090 = vcmask 195584
  %v2091 = vsel %vm2090, %v2088, %v2081
  %v2092 = vsel %vm2090, %v2089, %v2083
  %v2093 = vld [vmem:[%s3] sm:$0xff]
  %v2094 = vld [vmem:[%s3 + $0x8] sm:$0xff]
  %v2095 = vld [vmem:[%s3 + $0x10] sm:$0xff]
  %v2096 = vld [vmem:[%s3 + $0x18] sm:$0xff]
  %v2097 = vld [vmem:[%s4] sm:$0x1]
  %v2099 = vlaneseq
  %v2100 = vshrl.u32 %v2099, 7
  %v2101 = vsub.s32 0, %v2100
  %v2102 = vrot.slane %v2097, %v2101
  %v2105 = vsel %vm36, %v2091, 0
  %v2108 = vsel %vm36, %v2092, 0
  %2110 = vmatprep.subr.mxu0 0.0
  %2111 = vmatpush1.msra.mxu0 %v2093
  %2112 = vmatprep.subr.mxu0 0.0
  %2113 = vmatpush1.msra.mxu0 %v2094
  %2114 = vmatprep.subr.mxu0 0.0
  %2115 = vmatpush1.msra.mxu0 %v2095
  %2116 = vmatprep.subr.mxu0 0.0
  %2117 = vmatpush1.msra.mxu0 %v2096
  %2118 = vmatprep.subr.mxu0 0.0
  %2119 = vmatpush1.msra.mxu0 0.0
  %2120 = vmatprep.subr.mxu0 0.0
  %2121 = vmatpush1.msra.mxu0 0.0
  %2122 = vmatprep.subr.mxu0 0.0
  %2123 = vmatpush1.msra.mxu0 0.0
  %2124 = vmatprep.subr.mxu0 0.0
  %2125 = vmatpush1.msra.mxu0 0.0
  %2126 = vmatprep.subr.mxu0 0.0
  %2127 = vmatpush1.msra.mxu0 0.0
  %2128 = vmatprep.subr.mxu0 0.0
  %2129 = vmatpush1.msra.mxu0 0.0
  %2130 = vmatprep.subr.mxu0 0.0
  %2131 = vmatpush1.msra.mxu0 0.0
  %2132 = vmatprep.subr.mxu0 0.0
  %2133 = vmatpush1.msra.mxu0 0.0
  %2134 = vmatprep.subr.mxu0 0.0
  %2135 = vmatpush1.msra.mxu0 0.0
  %2136 = vmatprep.subr.mxu0 0.0
  %2137 = vmatpush1.msra.mxu0 0.0
  %2138 = vmatprep.subr.mxu0 0.0
  %2139 = vmatpush1.msra.mxu0 0.0
  %2140 = vmatprep.subr.mxu0 0.0
  %2141 = vmatpush1.msra.mxu0 0.0
  %2142 = vmatprep.subr.mxu0 0.0
  %2143 = vmatpush1.msra.mxu0 0.0
  %2144 = vmatprep.subr.mxu0 0.0
  %2145 = vmatpush1.msra.mxu0 0.0
  %2146 = vmatprep.subr.mxu0 0.0
  %2147 = vmatpush1.msra.mxu0 0.0
  %2148 = vmatprep.subr.mxu0 0.0
  %2149 = vmatpush1.msra.mxu0 0.0
  %2150 = vmatprep.subr.mxu0 0.0
  %2151 = vmatpush1.msra.mxu0 0.0
  %2152 = vmatprep.subr.mxu0 0.0
  %2153 = vmatpush1.msra.mxu0 0.0
  %2154 = vmatprep.subr.mxu0 0.0
  %2155 = vmatpush1.msra.mxu0 0.0
  %2156 = vmatprep.subr.mxu0 0.0
  %2157 = vmatpush1.msra.mxu0 0.0
  %2158 = vmatprep.subr.mxu0 0.0
  %2159 = vmatpush1.msra.mxu0 0.0
  %2160 = vmatprep.subr.mxu0 0.0
  %2161 = vmatpush1.msra.mxu0 0.0
  %2162 = vmatprep.subr.mxu0 0.0
  %2163 = vmatpush1.msra.mxu0 0.0
  %2164 = vmatprep.subr.mxu0 0.0
  %2165 = vmatpush1.msra.mxu0 0.0
  %2166 = vmatprep.subr.mxu0 0.0
  %2167 = vmatpush1.msra.mxu0 0.0
  %2168 = vmatprep.subr.mxu0 0.0
  %2169 = vmatpush1.msra.mxu0 0.0
  %2170 = vmatprep.subr.mxu0 0.0
  %2171 = vmatpush1.msra.mxu0 0.0
  %2172 = vmatprep.subr.mxu0 0.0
  %2173 = vmatpush1.msra.mxu0 0.0
  %2174 = vmatprep.mubr.f32.mxu0 0.0
  %2175 = vmatmul.mubr.f32.gmra.mrb[0].mxu0 %v2105
  %v2176 = vpop.f32.mrb[0].mxu0
  %v2177 = vadd.f32 %v2102, %v2176
  %v2178 = vpop.f32.mrb[0].mxu0
  %2179 = vmatprep.mubr.f32.mxu0 0.0
  %2180 = vmatmul.mubr.f32.gmra.mrb[0].mxu0 %v2108
  %v2181 = vpop.f32.mrb[0].mxu0
  %v2182 = vadd.f32 %v2102, %v2181
  %v2183 = vpop.f32.mrb[0].mxu0
  %2184 = vdwg.mxu0
  %2185 = vst [vmem:[%s6] sm:$0xff] %v2177
  %2186 = vst [vmem:[%s6 + $0x8] sm:$0xff] %v2182
  // Predicated region
  $region26: #{multi_head_attention.1} parent=0 // pred_check
    _
  $region27: #{multi_head_attention.1} parent=0 // pred_check_branch
    %2188 = sbr.rel (0) target = $region29
  $region28: #{multi_head_attention.1} parent=0 // pred_region
    _
  $region29: #{multi_head_attention.1} parent=0 // pred_fallthru
    _
  // Predicated region
  $region30: #{multi_head_attention.1} parent=0 // pred_check
    _
  $region31: #{multi_head_attention.1} parent=0 // pred_check_branch
    %2190 = sbr.rel (0) target = $region33
  $region32: #{multi_head_attention.1} parent=0 // pred_region
    _
  $region33: #{multi_head_attention.1} parent=0 // pred_fallthru
    _

</llo_original>
